<compile_context>
chip_gen: v5e
topology: v5e:2x2
jax: 0.10.0
libtpu: 0.0.40
codegen_flags: <defaults>
</compile_context>

<pallas_src>
import jax
import jax.numpy as jnp
import numpy as np
from jax.experimental import pallas as pl
from jax.experimental.pallas import tpu as pltpu


def _round_up(x, m):
    return ((x + m - 1) // m) * m


def _row_chunk(block_b):
    for rc in (64, 32, 16, 8):
        if block_b % rc == 0:
            return rc
    return block_b


def _sigmoid(x, approx):
    denom = 1.0 + jnp.exp(-x)
    if approx:
        return pl.reciprocal(denom, approx=True)   # EUP slot, bf16-tolerance path
    return 1.0 / denom


# ----------------------------------------------------------------------------
# VMEM budget (generation-aware)
# ----------------------------------------------------------------------------
def _vmem_limit_bytes(block_b, kp, w_isz, a_isz, o_isz):
    est = (2 * kp * 512 * w_isz            # weight tile, double-buffered along j
           + 2 * 512 * 4                   # bias tile
           + 2 * block_b * kp * a_isz      # activation tile, double-buffered
           + 2 * block_b * 128 * o_isz     # output tile, double-buffered
           + block_b * 512 * 4)            # z scratch (f32)
    try:
        cap = int(pltpu.get_tpu_info().vmem_capacity_bytes)
    except Exception:  # noqa: BLE001
        cap = 64 << 20                     # conservative: v7x per-TC VMEM
    budget = int(cap * 0.85)               # headroom for compiler internals
    return int(min(budget, max(32 << 20, est + (4 << 20))))


# ----------------------------------------------------------------------------
# Kernel builder: one merged matmul into VMEM scratch + chunked gated epilogue
# ----------------------------------------------------------------------------
def _build_call(bp, kp, fp, block_b, act_dtype, w_dtype, out_dtype):
    nb = bp // block_b
    nj = fp // 128
    rc = _row_chunk(block_b)
    n_chunks = block_b // rc
    approx = (jnp.dtype(w_dtype) == jnp.dtype(jnp.bfloat16)
              or jnp.dtype(out_dtype) == jnp.dtype(jnp.bfloat16))

    def kernel(x_ref, w_ref, b_ref, out_ref, z_ref):
        x = x_ref[...]
        if x.dtype != w_ref.dtype:
            x = x.astype(w_ref.dtype)      # in-kernel cast, hidden under the matmul
        # Single merged matmul (f32 MXU accumulation) into VMEM scratch.
        z_ref[...] = (jnp.dot(x, w_ref[...], preferred_element_type=jnp.float32)
                      + b_ref[...])

        # Gated epilogue in 64-row chunks; every column slice is 128-lane aligned.
        def body(c, carry):
            r0 = pl.multiple_of(c * rc, rc)
            rows = pl.ds(r0, rc)
            gate_val = _sigmoid(z_ref[rows, 0:128], approx)
            fused = gate_val * z_ref[rows, 128:256]
            orig = z_ref[rows, 384:512]
            gate_orig = _sigmoid(z_ref[rows, 256:384], approx)
            out_ref[rows, :] = (orig + gate_orig * (fused - orig)).astype(out_ref.dtype)
            return carry

        jax.lax.fori_loop(0, n_chunks, body, 0, unroll=True)

    grid_spec = pltpu.PrefetchScalarGridSpec(
        num_scalar_prefetch=0,
        grid=(nb, nj),
        in_specs=[
            pl.BlockSpec((block_b, kp), lambda i, j: (i, 0)),   # activations
            pl.BlockSpec((kp, 512), lambda i, j: (0, j)),       # weight chunk j
            pl.BlockSpec((1, 512), lambda i, j: (0, j)),        # bias chunk j
        ],
        out_specs=pl.BlockSpec((block_b, 128), lambda i, j: (i, j)),
        scratch_shapes=[pltpu.VMEM((block_b, 512), jnp.float32)],
    )
    vmem_limit = _vmem_limit_bytes(
        block_b, kp,
        jnp.dtype(w_dtype).itemsize, jnp.dtype(act_dtype).itemsize,
        jnp.dtype(out_dtype).itemsize)
    return pl.pallas_call(
        kernel,
        out_shape=jax.ShapeDtypeStruct((bp, fp), out_dtype),
        grid_spec=grid_spec,
        compiler_params=pltpu.CompilerParams(
            dimension_semantics=("parallel", "arbitrary"),
            vmem_limit_bytes=vmem_limit),
    )


# ----------------------------------------------------------------------------
# Host-side weight folding into one interleaved packed matrix
# ----------------------------------------------------------------------------
def fold_params(params, dim_swin, dim_resnet, fused_dim, *, weight_dtype=jnp.float32):
    """Fold the 14 linears into a single (Kp, nj*512) weight + (1, nj*512) bias.

    Exact for eval mode (no attention dropout): seq_len == 1 => softmax == 1.
    Columns are interleaved per 128-lane chunk j of the (padded) fused dim:
        [ gate_val_pre_j | fused_pre_j | gate_orig_pre_j | orig_proj_j ].
    """
    p = params
    F = fused_dim
    Fp = _round_up(F, 128)
    Ds, Dr = dim_swin, dim_resnet
    Kp = _round_up(Ds + Dr, 128)
    nj = Fp // 128

    # Exact affine form of each attention branch.
    Wa1 = p["wvp1"] @ p["wvin1"] @ p["wo1"]                       # resnet -> attn1
    ba1 = (p["bvp1"] @ p["wvin1"] + p["bvin1"]) @ p["wo1"] + p["bo1"]
    Wa2 = p["wvp2"] @ p["wvin2"] @ p["wo2"]                       # swin   -> attn2
    ba2 = (p["bvp2"] @ p["wvin2"] + p["bvin2"]) @ p["wo2"] + p["bo2"]

    # Column groups [gate_val_pre | fused_pre | gate_orig_pre | orig_proj],
    # split by which half of the merged contraction dim (swin rows / resnet rows).
    ws_blocks = [Wa2 @ p["wgb"], Wa2 @ p["wfb"], p["wfgs"], p["wffs"]]   # (Ds, F)
    wr_blocks = [Wa1 @ p["wga"], Wa1 @ p["wfa"], p["wfgr"], p["wffr"]]   # (Dr, F)
    b_blocks = [ba1 @ p["wga"] + ba2 @ p["wgb"] + p["bg"],
                ba1 @ p["wfa"] + ba2 @ p["wfb"] + p["bf"],
                p["bfg"], p["bff"]]                                      # (1, F)

    def merge_rows(swin_blk, res_blk):
        blk = jnp.concatenate([swin_blk, res_blk], axis=0)               # (Ds+Dr, F)
        return jnp.pad(blk, ((0, Kp - (Ds + Dr)), (0, Fp - F)))          # (Kp, Fp)

    merged = [merge_rows(s, r) for s, r in zip(ws_blocks, wr_blocks)]
    bias = [jnp.pad(b, ((0, 0), (0, Fp - F))) for b in b_blocks]

    def interleave(blocks, rows):
        stacked = jnp.stack([blk.reshape(rows, nj, 128) for blk in blocks], axis=2)
        return stacked.reshape(rows, nj * 4 * 128)

    return {
        "w": interleave(merged, Kp).astype(weight_dtype),
        "b": interleave(bias, 1).astype(jnp.float32),   # bias added to f32 acc
        "fused_dim": F, "padded_dim": Fp, "k_padded": Kp,
        "dim_swin": Ds, "dim_resnet": Dr,
    }


# ----------------------------------------------------------------------------
# Wrapper
# ----------------------------------------------------------------------------
def _pick_block_b(B, requested):
    if requested is not None:
        bb = _round_up(requested, 8)
        return max(8, min(bb, _round_up(B, 8)))
    # Auto: largest of {512, 256, 128} giving >= 4 grid steps on the batch axis
    # (keeps both v7x TensorCores busy with >= 2 steps each), else >= 2 steps,
    # else a single tile covering the 8-padded batch.
    for cand in (512, 256, 128):
        if B >= 4 * cand:
            return cand
    for cand in (512, 256, 128):
        if B >= 2 * cand:
            return cand
    return _round_up(B, 8)


def cross_attention_fusion(swin_feat, resnet_feat, folded, *, block_b=None,
                           out_dtype=None):
    w, bb = folded["w"], folded["b"]
    F, Fp, Kp = folded["fused_dim"], folded["padded_dim"], folded["k_padded"]
    Ds, Dr = folded["dim_swin"], folded["dim_resnet"]
    B, ds = swin_feat.shape
    br, dr = resnet_feat.shape
    assert br == B and ds == Ds and dr == Dr

    # Merge the two inputs into one contraction-padded activation (single matmul).
    # No dtype cast here: a bf16 cast (if weights are bf16) happens in-kernel.
    x = jnp.concatenate([swin_feat, resnet_feat], axis=1)
    if Kp > Ds + Dr:
        x = jnp.pad(x, ((0, 0), (0, Kp - Ds - Dr)))

    block_b = _pick_block_b(B, block_b)
    Bp = _round_up(B, block_b)
    if Bp != B:
        x = jnp.pad(x, ((0, Bp - B), (0, 0)))

    if out_dtype is None:
        out_dtype = jnp.bfloat16 if w.dtype == jnp.bfloat16 else jnp.float32

    call = _build_call(Bp, Kp, Fp, block_b, x.dtype, w.dtype, out_dtype)
    out = call(x, w, bb)
    return out[:B, :F]


# ----------------------------------------------------------------------------
# Synthetic parameters (PyTorch layout, pre-transposed to (in, out)) + reference
# ----------------------------------------------------------------------------
def init_params(key, dim_swin, dim_resnet, fused_dim):
    """Only the value slice of each MHA in_proj is materialised: for seq_len==1
    the Q/K projections provably cannot affect the output."""
    names_shapes = [
        ("wvp1", (dim_resnet, fused_dim)), ("bvp1", (1, fused_dim)),
        ("wvin1", (fused_dim, fused_dim)), ("bvin1", (1, fused_dim)),
        ("wo1", (fused_dim, fused_dim)), ("bo1", (1, fused_dim)),
        ("wvp2", (dim_swin, fused_dim)), ("bvp2", (1, fused_dim)),
        ("wvin2", (fused_dim, fused_dim)), ("bvin2", (1, fused_dim)),
        ("wo2", (fused_dim, fused_dim)), ("bo2", (1, fused_dim)),
        ("wga", (fused_dim, fused_dim)), ("wgb", (fused_dim, fused_dim)),
        ("bg", (1, fused_dim)),
        ("wfa", (fused_dim, fused_dim)), ("wfb", (fused_dim, fused_dim)),
        ("bf", (1, fused_dim)),
        ("wfgs", (dim_swin, fused_dim)), ("wfgr", (dim_resnet, fused_dim)),
        ("bfg", (1, fused_dim)),
        ("wffs", (dim_swin, fused_dim)), ("wffr", (dim_resnet, fused_dim)),
        ("bff", (1, fused_dim)),
    ]
    keys = jax.random.split(key, len(names_shapes))
    params = {}
    for (name, shape), k in zip(names_shapes, keys):
        params[name] = (0.05 * jax.random.normal(k, shape)).astype(jnp.float32)
    return params


def reference(swin, res, p):
    """Pure-JAX reference mirroring the PyTorch forward (explicit concats,
    un-folded linear chains)."""
    def lin(x, w, b):
        return x @ w + b[0]
    attn1 = lin(lin(lin(res, p["wvp1"], p["bvp1"]), p["wvin1"], p["bvin1"]),
                p["wo1"], p["bo1"])
    attn2 = lin(lin(lin(swin, p["wvp2"], p["bvp2"]), p["wvin2"], p["bvin2"]),
                p["wo2"], p["bo2"])
    attn_concat = jnp.concatenate([attn1, attn2], axis=1)
    wg = jnp.concatenate([p["wga"], p["wgb"]], axis=0)
    wf = jnp.concatenate([p["wfa"], p["wfb"]], axis=0)
    gate_val = jax.nn.sigmoid(lin(attn_concat, wg, p["bg"]))
    fused_attn = gate_val * lin(attn_concat, wf, p["bf"])
    orig_concat = jnp.concatenate([swin, res], axis=1)
    wfg = jnp.concatenate([p["wfgs"], p["wfgr"]], axis=0)
    wff = jnp.concatenate([p["wffs"], p["wffr"]], axis=0)
    gate_orig = jax.nn.sigmoid(lin(orig_concat, wfg, p["bfg"]))
    orig_proj = lin(orig_concat, wff, p["bff"])
    return gate_orig * fused_attn + (1.0 - gate_orig) * orig_proj


if __name__ == "__main__":
    # num_heads is irrelevant to the result (seq_len == 1 softmax is exact 1.0).
    # FUSED=256 exercises the interleaved-weight second grid axis (nj = 2).
    B, DIM_SWIN, DIM_RESNET, FUSED = 256, 32, 48, 256

    key = jax.random.PRNGKey(0)
    k_swin, k_res, k_par = jax.random.split(key, 3)
    swin_feat = jax.random.normal(k_swin, (B, DIM_SWIN), dtype=jnp.float32)
    resnet_feat = jax.random.normal(k_res, (B, DIM_RESNET), dtype=jnp.float32)
    params = init_params(k_par, DIM_SWIN, DIM_RESNET, FUSED)
    ref = reference(swin_feat, resnet_feat, params)

    # f32-weight / f32-output path: tight check against the un-folded reference.
    folded_f32 = fold_params(params, DIM_SWIN, DIM_RESNET, FUSED,
                             weight_dtype=jnp.float32)
    out_f32 = jax.block_until_ready(
        cross_attention_fusion(swin_feat, resnet_feat, folded_f32,
                               out_dtype=jnp.float32))
    np.testing.assert_allclose(np.asarray(out_f32), np.asarray(ref),
                               rtol=1e-4, atol=1e-4)

    # bf16-weight / bf16-output path: halves weight DMA and output writeback,
    # f32 MXU accumulation; looser check (precision tradeoff vs f32 reference).
    folded_bf16 = fold_params(params, DIM_SWIN, DIM_RESNET, FUSED,
                              weight_dtype=jnp.bfloat16)
    out_bf16 = jax.block_until_ready(
        cross_attention_fusion(swin_feat, resnet_feat, folded_bf16))
    np.testing.assert_allclose(np.asarray(out_bf16, dtype=np.float32),
                               np.asarray(ref), rtol=2e-2, atol=2e-2)

    print("KERNEL_OK")
</pallas_src>

<mosaic_0001>
module attributes {stable_mosaic.version = 11 : i64} {
  func.func @kernel(%arg0: i32, %arg1: i32, %arg2: memref<128x128xf32, #tpu.memory_space<vmem>>, %arg3: memref<128x512xf32, #tpu.memory_space<vmem>>, %arg4: memref<1x512xf32, #tpu.memory_space<vmem>>, %arg5: memref<128x128xf32, #tpu.memory_space<vmem>>, %arg6: memref<128x512xf32, #tpu.memory_space<vmem>>) attributes {dimension_semantics = [#tpu.dimension_semantics<parallel>, #tpu.dimension_semantics<arbitrary>], iteration_bounds = array<i64: 2, 2>, scalar_prefetch = 0 : i64, scratch_operands = 1 : i64, tpu.core_type = #tpu.core_type<tc>, window_params = [{transform_indices = @transform_0, window_bounds = array<i64: 128, 128>}, {transform_indices = @transform_1, window_bounds = array<i64: 128, 512>}, {transform_indices = @transform_2, window_bounds = array<i64: 1, 512>}, {transform_indices = @transform_3, window_bounds = array<i64: 128, 128>}]} {
    %c0 = arith.constant 0 : index
    %c0_0 = arith.constant 0 : index
    %0 = vector.load %arg2[%c0, %c0_0] : memref<128x128xf32, #tpu.memory_space<vmem>>, vector<128x128xf32>
    %c0_1 = arith.constant 0 : index
    %c0_2 = arith.constant 0 : index
    %1 = vector.load %arg3[%c0_1, %c0_2] : memref<128x512xf32, #tpu.memory_space<vmem>>, vector<128x512xf32>
    %cst = arith.constant dense<0.000000e+00> : vector<128x512xf32>
    %2 = tpu.matmul %0, %1, %cst {dimension_numbers = #tpu.dot_dimension_numbers<[1], [0], [0], [1], [0, 0, 1, 1], [], []>} : vector<128x128xf32>, vector<128x512xf32>, vector<128x512xf32> -> vector<128x512xf32>
    %c0_3 = arith.constant 0 : index
    %c0_4 = arith.constant 0 : index
    %3 = vector.load %arg4[%c0_3, %c0_4] : memref<1x512xf32, #tpu.memory_space<vmem>>, vector<1x512xf32>
    %4 = vector.broadcast %3 : vector<1x512xf32> to vector<128x512xf32>
    %5 = arith.addf %2, %4 : vector<128x512xf32>
    %c0_5 = arith.constant 0 : index
    %c0_6 = arith.constant 0 : index
    %6 = vector.load %arg6[%c0_5, %c0_6] : memref<128x512xf32, #tpu.memory_space<vmem>>, vector<128x512xf32>
    tpu.vector_store %arg6[%c0_5, %c0_6], %5 {strides = array<i32>} : memref<128x512xf32, #tpu.memory_space<vmem>>, vector<128x512xf32>,
    %c0_i32 = arith.constant 0 : i32
    %c64_i32 = arith.constant 64 : i32
    %7 = arith.muli %c0_i32, %c64_i32 : i32
    %8 = tpu.assume_multiple %7, 64 : i32
    %9 = arith.index_cast %8 : i32 to index
    %c0_7 = arith.constant 0 : index
    %10 = vector.load %arg6[%9, %c0_7] : memref<128x512xf32, #tpu.memory_space<vmem>>, vector<64x128xf32>
    %cst_8 = arith.constant 0.000000e+00 : f32
    %11 = vector.broadcast %cst_8 : f32 to vector<64x128xf32>
    %12 = arith.subf %11, %10 : vector<64x128xf32>
    %13 = math.exp %12 : vector<64x128xf32>
    %cst_9 = arith.constant 1.000000e+00 : f32
    %14 = vector.broadcast %cst_9 : f32 to vector<64x128xf32>
    %15 = arith.addf %14, %13 : vector<64x128xf32>
    %cst_10 = arith.constant 1.000000e+00 : f32
    %16 = vector.broadcast %cst_10 : f32 to vector<64x128xf32>
    %17 = arith.divf %16, %15 : vector<64x128xf32>
    %18 = arith.index_cast %8 : i32 to index
    %c128 = arith.constant 128 : index
    %19 = vector.load %arg6[%18, %c128] : memref<128x512xf32, #tpu.memory_space<vmem>>, vector<64x128xf32>
    %20 = arith.mulf %17, %19 : vector<64x128xf32>
    %21 = arith.index_cast %8 : i32 to index
    %c384 = arith.constant 384 : index
    %22 = vector.load %arg6[%21, %c384] : memref<128x512xf32, #tpu.memory_space<vmem>>, vector<64x128xf32>
    %23 = arith.index_cast %8 : i32 to index
    %c256 = arith.constant 256 : index
    %24 = vector.load %arg6[%23, %c256] : memref<128x512xf32, #tpu.memory_space<vmem>>, vector<64x128xf32>
    %cst_11 = arith.constant 0.000000e+00 : f32
    %25 = vector.broadcast %cst_11 : f32 to vector<64x128xf32>
    %26 = arith.subf %25, %24 : vector<64x128xf32>
    %27 = math.exp %26 : vector<64x128xf32>
    %cst_12 = arith.constant 1.000000e+00 : f32
    %28 = vector.broadcast %cst_12 : f32 to vector<64x128xf32>
    %29 = arith.addf %28, %27 : vector<64x128xf32>
    %cst_13 = arith.constant 1.000000e+00 : f32
    %30 = vector.broadcast %cst_13 : f32 to vector<64x128xf32>
    %31 = arith.divf %30, %29 : vector<64x128xf32>
    %32 = arith.subf %20, %22 : vector<64x128xf32>
    %33 = arith.mulf %31, %32 : vector<64x128xf32>
    %34 = arith.addf %22, %33 : vector<64x128xf32>
    %35 = arith.index_cast %8 : i32 to index
    %c0_14 = arith.constant 0 : index
    %36 = vector.load %arg5[%35, %c0_14] : memref<128x128xf32, #tpu.memory_space<vmem>>, vector<64x128xf32>
    tpu.vector_store %arg5[%35, %c0_14], %34 {strides = array<i32>} : memref<128x128xf32, #tpu.memory_space<vmem>>, vector<64x128xf32>,
    %c1_i32 = arith.constant 1 : i32
    %c64_i32_15 = arith.constant 64 : i32
    %37 = arith.muli %c1_i32, %c64_i32_15 : i32
    %38 = tpu.assume_multiple %37, 64 : i32
    %39 = arith.index_cast %38 : i32 to index
    %c0_16 = arith.constant 0 : index
    %40 = vector.load %arg6[%39, %c0_16] : memref<128x512xf32, #tpu.memory_space<vmem>>, vector<64x128xf32>
    %cst_17 = arith.constant 0.000000e+00 : f32
    %41 = vector.broadcast %cst_17 : f32 to vector<64x128xf32>
    %42 = arith.subf %41, %40 : vector<64x128xf32>
    %43 = math.exp %42 : vector<64x128xf32>
    %cst_18 = arith.constant 1.000000e+00 : f32
    %44 = vector.broadcast %cst_18 : f32 to vector<64x128xf32>
    %45 = arith.addf %44, %43 : vector<64x128xf32>
    %cst_19 = arith.constant 1.000000e+00 : f32
    %46 = vector.broadcast %cst_19 : f32 to vector<64x128xf32>
    %47 = arith.divf %46, %45 : vector<64x128xf32>
    %48 = arith.index_cast %38 : i32 to index
    %c128_20 = arith.constant 128 : index
    %49 = vector.load %arg6[%48, %c128_20] : memref<128x512xf32, #tpu.memory_space<vmem>>, vector<64x128xf32>
    %50 = arith.mulf %47, %49 : vector<64x128xf32>
    %51 = arith.index_cast %38 : i32 to index
    %c384_21 = arith.constant 384 : index
    %52 = vector.load %arg6[%51, %c384_21] : memref<128x512xf32, #tpu.memory_space<vmem>>, vector<64x128xf32>
    %53 = arith.index_cast %38 : i32 to index
    %c256_22 = arith.constant 256 : index
    %54 = vector.load %arg6[%53, %c256_22] : memref<128x512xf32, #tpu.memory_space<vmem>>, vector<64x128xf32>
    %cst_23 = arith.constant 0.000000e+00 : f32
    %55 = vector.broadcast %cst_23 : f32 to vector<64x128xf32>
    %56 = arith.subf %55, %54 : vector<64x128xf32>
    %57 = math.exp %56 : vector<64x128xf32>
    %cst_24 = arith.constant 1.000000e+00 : f32
    %58 = vector.broadcast %cst_24 : f32 to vector<64x128xf32>
    %59 = arith.addf %58, %57 : vector<64x128xf32>
    %cst_25 = arith.constant 1.000000e+00 : f32
    %60 = vector.broadcast %cst_25 : f32 to vector<64x128xf32>
    %61 = arith.divf %60, %59 : vector<64x128xf32>
    %62 = arith.subf %50, %52 : vector<64x128xf32>
    %63 = arith.mulf %61, %62 : vector<64x128xf32>
    %64 = arith.addf %52, %63 : vector<64x128xf32>
    %65 = arith.index_cast %38 : i32 to index
    %c0_26 = arith.constant 0 : index
    %66 = vector.load %arg5[%65, %c0_26] : memref<128x128xf32, #tpu.memory_space<vmem>>, vector<64x128xf32>
    tpu.vector_store %arg5[%65, %c0_26], %64 {strides = array<i32>} : memref<128x128xf32, #tpu.memory_space<vmem>>, vector<64x128xf32>,
    %c2_i32 = arith.constant 2 : i32
    return
  }
  func.func @transform_0(%arg0: i32, %arg1: i32) -> (i32, i32) {
    %c0_i32 = arith.constant 0 : i32
    %c0_i32_0 = arith.constant 0 : i32
    return %arg0, %c0_i32 : i32, i32
  }
  func.func @transform_1(%arg0: i32, %arg1: i32) -> (i32, i32) {
    %c0_i32 = arith.constant 0 : i32
    %c0_i32_0 = arith.constant 0 : i32
    return %c0_i32, %arg1 : i32, i32
  }
  func.func @transform_2(%arg0: i32, %arg1: i32) -> (i32, i32) {
    %c0_i32 = arith.constant 0 : i32
    %c0_i32_0 = arith.constant 0 : i32
    return %c0_i32, %arg1 : i32, i32
  }
  func.func @transform_3(%arg0: i32, %arg1: i32) -> (i32, i32) {
    %c0_i32 = arith.constant 0 : i32
    return %arg0, %arg1 : i32, i32
  }
}

</mosaic_0001>

<llo_original>
// kernel: tpu_custom_call.1
$region0: #{tpu_custom_call.1}
  #allocation0 [shape = 'u32[]', space=smem, size = 0x4, offset = 0x4, fixed_abs, tag = 'smem constant byte address 0x4 - core index']
  #allocation1 [shape = 'u32[72,128]{1,0:T(1,128)}', space=vmem, size = 0x9000, scoped, tag = 'internal scratch']
  #allocation2 [shape = 'f32[128,512]{1,0:T(8,128)}', space=vmem, size = 0x40000, scoped, tag = 'scratch operand']
  %s0 = inlined_call_operand.hbm [shape: f32[256,128], index: 0, kind: input, shape index: {}]
  %s1 = inlined_call_operand.hbm [shape: f32[128,1024], index: 1, kind: input, shape index: {}]
  %s2 = inlined_call_operand.hbm [shape: f32[1,1024], index: 2, kind: input, shape index: {}]
  %s3 = inlined_call_operand.hbm [shape: f32[256,256], index: 3, kind: output, shape index: {}]
  %s4 = sld [smem:[#allocation0]]
  $region57: #{tpu_custom_call.1} parent=0
    _
  %s6 = ssub.s32 1, %s4
  %s7 = scalar_select 0, %s6, %s4
  $region1: #{tpu_custom_call.1} parent=0
    #allocation3 [shape = 'u8[131072]{0}', space=vmem, size = 0x20000, scoped, tag = 'input window, operand 0']
    #allocation4 [shape = 's32[2]{0}', space=sflag, size = 0x8, scoped, tag = 'scoped memory for tpu_custom_call.1']
    #allocation5 [shape = 's32[2]{0}', space=sflag, size = 0x8, scoped, tag = 'scoped memory for tpu_custom_call.1']
    #allocation6 [shape = 'u8[524288]{0}', space=vmem, size = 0x80000, scoped, tag = 'input window, operand 1']
    #allocation7 [shape = 's32[2]{0}', space=sflag, size = 0x8, scoped, tag = 'scoped memory for tpu_custom_call.1']
    #allocation8 [shape = 'u8[4096]{0}', space=vmem, size = 0x1000, scoped, tag = 'input window, operand 2']
    #allocation9 [shape = 'u8[131072]{0}', space=vmem, size = 0x20000, scoped, tag = 'output window, operand 0']
    %8 = vsyncpa [#allocation4], 0
    %s9 = scalar_lea.sflag [#allocation4], 1
    %10 = vsyncpa %s9, 0
    %11 = vsyncpa [#allocation7], 0
    %s12 = scalar_lea.sflag [#allocation7], 1
    %13 = vsyncpa %s12, 0
    %14 = vsyncpa [#allocation5], 0
    %s15 = scalar_lea.sflag [#allocation5], 1
    %16 = vsyncpa %s15, 0
    loop: start=0, step=1, limit=6
    $region2: #{tpu_custom_call.1} parent=1 // loop_pre_header
      _
    $region3: #{tpu_custom_call.1} parent=1 // loop_header
      %s18 = sphi 0, %s22
      %p19 = scmp.ge.s32.totalorder %s18, 6
      %s25 = sphi 0, %s37
      %s26 = sphi 0, %s33
      %s27 = sphi 0, %s25
      %s28 = sphi 0, %s26
      %s29 = sphi 0, %s27
      %s30 = sphi 0, %s28
      %s40 = sphi 0, %s42
      %s43 = sphi 0, %s40
      %s44 = sphi 0, %s43
      %s60 = sphi 0, %s44
      %s66 = sphi 0, %s68
      %s69 = sphi 0, %s66
      %s70 = sphi 0, %s69
      %s86 = sphi 0, %s70
      %s92 = sphi 0, %s94
      %s95 = sphi 0, %s92
      %s96 = sphi 0, %s95
      %s112 = sphi 0, %s96
      %s120 = sphi 0, %s122
      %s123 = sphi 0, %s120
      %s124 = sphi 0, %s123
      %s140 = sphi 0, %s124
    $region4: #{tpu_custom_call.1} parent=1 // loop_header_branch
      %21 = sbr.rel (%p19) target = $region8
    $region5: #{tpu_custom_call.1} parent=1 // loop_body
      %s23 = ssub.s32 %s18, 1
      %s24 = ssub.s32 %s18, 2
      %s31 = sadd.s32 1, %s26
      %p32 = scmp.ge.s32.totalorder %s31, 2
      %s33 = scalar_select %p32, 0, %s31
      %s34 = sadd.s32 1, %s25
      %s35 = scalar_select %p32, %s34, %s25
      %p36 = scmp.ge.s32.totalorder %s35, 2
      %s37 = scalar_select %p36, 0, %s35
      %s38 = ssub.s32 %s25, %s37
      %p39 = scmp.eq.s32.totalorder %s38, 0
      %s41 = sadd.s32 %s40, 1
      %s42 = scalar_select %p39, %s40, %s41
      %p45 = pneg %p39
      %p46 = scmp.eq.s32.totalorder %s18, 3
      %p47 = por %p45, %p46
      %p48 = scmp.ne.s32.totalorder %s40, %s43
      %p49 = scmp.eq.s32.totalorder %s18, 0
      %p50 = por %p48, %p49
      %p51 = scmp.ne.s32.totalorder %s40, %s43
      %p52 = scmp.eq.s32.totalorder %s23, 3
      %p53 = por %p51, %p52
      %p54 = scmp.ne.s32.totalorder %s43, %s44
      %p55 = scmp.eq.s32.totalorder %s23, 0
      %p56 = por %p54, %p55
      %p57 = scmp.ne.s32.totalorder %s43, %s44
      %p58 = scmp.eq.s32.totalorder %s24, 3
      %p59 = por %p57, %p58
      %p61 = scmp.ne.s32.totalorder %s44, %s60
      %p62 = scmp.eq.s32.totalorder %s24, 0
      %p63 = por %p61, %p62
      %s64 = ssub.s32 %s26, %s33
      %p65 = scmp.eq.s32.totalorder %s64, 0
      %s67 = sadd.s32 %s66, 1
      %s68 = scalar_select %p65, %s66, %s67
      %p71 = pneg %p65
      %p72 = scmp.eq.s32.totalorder %s18, 3
      %p73 = por %p71, %p72
      %p74 = scmp.ne.s32.totalorder %s66, %s69
      %p75 = scmp.eq.s32.totalorder %s18, 0
      %p76 = por %p74, %p75
      %p77 = scmp.ne.s32.totalorder %s66, %s69
      %p78 = scmp.eq.s32.totalorder %s23, 3
      %p79 = por %p77, %p78
      %p80 = scmp.ne.s32.totalorder %s69, %s70
      %p81 = scmp.eq.s32.totalorder %s23, 0
      %p82 = por %p80, %p81
      %p83 = scmp.ne.s32.totalorder %s69, %s70
      %p84 = scmp.eq.s32.totalorder %s24, 3
      %p85 = por %p83, %p84
      %p87 = scmp.ne.s32.totalorder %s70, %s86
      %p88 = scmp.eq.s32.totalorder %s24, 0
      %p89 = por %p87, %p88
      %s90 = ssub.s32 %s26, %s33
      %p91 = scmp.eq.s32.totalorder %s90, 0
      %s93 = sadd.s32 %s92, 1
      %s94 = scalar_select %p91, %s92, %s93
      %p97 = pneg %p91
      %p98 = scmp.eq.s32.totalorder %s18, 3
      %p99 = por %p97, %p98
      %p100 = scmp.ne.s32.totalorder %s92, %s95
      %p101 = scmp.eq.s32.totalorder %s18, 0
      %p102 = por %p100, %p101
      %p103 = scmp.ne.s32.totalorder %s92, %s95
      %p104 = scmp.eq.s32.totalorder %s23, 3
      %p105 = por %p103, %p104
      %p106 = scmp.ne.s32.totalorder %s95, %s96
      %p107 = scmp.eq.s32.totalorder %s23, 0
      %p108 = por %p106, %p107
      %p109 = scmp.ne.s32.totalorder %s95, %s96
      %p110 = scmp.eq.s32.totalorder %s24, 3
      %p111 = por %p109, %p110
      %p113 = scmp.ne.s32.totalorder %s96, %s112
      %p114 = scmp.eq.s32.totalorder %s24, 0
      %p115 = por %p113, %p114
      %s116 = ssub.s32 %s25, %s37
      %s117 = ssub.s32 %s26, %s33
      %s118 = sor.u32 %s116, %s117
      %p119 = scmp.eq.s32.totalorder %s118, 0
      %s121 = sadd.s32 %s120, 1
      %s122 = scalar_select %p119, %s120, %s121
      %p125 = pneg %p119
      %p126 = scmp.eq.s32.totalorder %s18, 3
      %p127 = por %p125, %p126
      %p128 = scmp.ne.s32.totalorder %s120, %s123
      %p129 = scmp.eq.s32.totalorder %s18, 0
      %p130 = por %p128, %p129
      %p131 = scmp.ne.s32.totalorder %s120, %s123
      %p132 = scmp.eq.s32.totalorder %s23, 3
      %p133 = por %p131, %p132
      %p134 = scmp.ne.s32.totalorder %s123, %s124
      %p135 = scmp.eq.s32.totalorder %s23, 0
      %p136 = por %p134, %p135
      %p137 = scmp.ne.s32.totalorder %s123, %s124
      %p138 = scmp.eq.s32.totalorder %s24, 3
      %p139 = por %p137, %p138
      %p141 = scmp.ne.s32.totalorder %s124, %s140
      %p142 = scmp.eq.s32.totalorder %s24, 0
      %p143 = por %p141, %p142
      %p144 = scmp.le.s32.totalorder 1, %s18
      %p145 = scmp.lt.s32.totalorder %s18, 5
      %p146 = pnand %p144, %p145
      %p147 = pneg %p146
      // Predicated region
      $region9: #{tpu_custom_call.1} parent=5 // pred_check
        _
      $region10: #{tpu_custom_call.1} parent=5 // pred_check_branch
        %149 = sbr.rel (%p146) target = $region12
      $region11: #{tpu_custom_call.1} parent=5 // pred_region
        %s150 = ssub.s32 %s18, 1
      $region12: #{tpu_custom_call.1} parent=5 // pred_fallthru
        _
      %p151 = scmp.lt.s32.totalorder %s18, 4
      // Predicated region
      $region13: #{tpu_custom_call.1} parent=5 // pred_check
        %p152 = pneg %p151
      $region14: #{tpu_custom_call.1} parent=5 // pred_check_branch
        %154 = sbr.rel (%p152) target = $region16
      $region15: #{tpu_custom_call.1} parent=5 // pred_region
        // Predicated region
        $region17: #{tpu_custom_call.1} parent=15 // pred_check
          %p155 = pneg %p50
        $region18: #{tpu_custom_call.1} parent=15 // pred_check_branch
          %157 = sbr.rel (%p155) target = $region20
        $region19: #{tpu_custom_call.1} parent=15 // pred_region
          %s158 = sand.u32 %s40, 1
          %s159 = scalar_lea.sflag [#allocation4], %s158
          %s160 = sand.u32 %s40, 1
          %s161 = smul.addr %s160, 128
          %s162 = scalar_lea.vmem [#allocation3], %s161
          %s163 = smul.u32 16, %s25
          %165 = vsyncadd %s159, 0
          %s166 = smul.addr %s163, 8
          %s167 = scalar_lea.hbm %s0, %s166
          %s168 = sshll.u32 %s167, 4
          %s169 = int_to_ptr.hbm [resolvable:$true] %s168
          %s170 = sshll.u32 %s162, 4
          %s171 = int_to_ptr.vmem [resolvable:$true] %s170
          %176 = dma.hbm_to_vmem [thread:$0]  %s169, 2048, %s171, %s159, 128, 128, 8
        $region20: #{tpu_custom_call.1} parent=15 // pred_fallthru
          _
        // Predicated region
        $region21: #{tpu_custom_call.1} parent=15 // pred_check
          %p177 = pneg %p76
        $region22: #{tpu_custom_call.1} parent=15 // pred_check_branch
          %179 = sbr.rel (%p177) target = $region24
        $region23: #{tpu_custom_call.1} parent=15 // pred_region
          %s180 = sand.u32 %s18, 1
          %s181 = scalar_lea.sflag [#allocation7], %s180
          %s182 = sand.u32 %s66, 1
          %s183 = smul.addr %s182, 512
          %s184 = scalar_lea.vmem [#allocation6], %s183
          %s185 = smul.u32 4, %s26
          %187 = vsyncadd %s181, 0
          %s188 = smul.addr %s185, 8
          %s189 = scalar_lea.hbm %s1, %s188
          %s190 = sshll.u32 %s189, 4
          %s191 = int_to_ptr.hbm [resolvable:$true] %s190
          %s192 = sshll.u32 %s184, 4
          %s193 = int_to_ptr.vmem [resolvable:$true] %s192
          %198 = dma.hbm_to_vmem [thread:$0]  %s191, 8192, %s193, %s181, 1024, 512, 32
        $region24: #{tpu_custom_call.1} parent=15 // pred_fallthru
          _
        // Predicated region
        $region25: #{tpu_custom_call.1} parent=15 // pred_check
          %p199 = pneg %p102
        $region26: #{tpu_custom_call.1} parent=15 // pred_check_branch
          %201 = sbr.rel (%p199) target = $region28
        $region27: #{tpu_custom_call.1} parent=15 // pred_region
          %s202 = sand.u32 %s18, 1
          %s203 = scalar_lea.sflag [#allocation7], %s202
          %s204 = sand.u32 %s92, 1
          %s205 = smul.addr %s204, 4
          %s206 = scalar_lea.vmem [#allocation8], %s205
          %s207 = smul.u32 4, %s26
          %209 = vsyncadd %s203, 0
          %s210 = scalar_lea.hbm %s2, %s207
          %s212 = sshll.u32 %s210, 4
          %s213 = int_to_ptr.hbm [resolvable:$true] %s212
          %s214 = sshll.u32 %s206, 4
          %s215 = int_to_ptr.vmem [resolvable:$true] %s214
          %217 = dma.hbm_to_vmem [thread:$0]  %s213, 64, %s215, %s203
        $region28: #{tpu_custom_call.1} parent=15 // pred_fallthru
          _
      $region16: #{tpu_custom_call.1} parent=5 // pred_fallthru
        _
      %p218 = scmp.le.s32.totalorder 1, %s18
      %p219 = scmp.lt.s32.totalorder %s18, 5
      %p220 = pnand %p218, %p219
      %p221 = pneg %p220
      // Predicated region
      $region29: #{tpu_custom_call.1} parent=5 // pred_check
        _
      $region30: #{tpu_custom_call.1} parent=5 // pred_check_branch
        %223 = sbr.rel (%p220) target = $region32
      $region31: #{tpu_custom_call.1} parent=5 // pred_region
        %s224 = ssub.s32 %s18, 1
        %s225 = sand.u32 %s43, 1
        %s226 = scalar_lea.sflag [#allocation4], %s225
        %s227 = sand.u32 %s43, 1
        %s228 = smul.addr %s227, 128
        %s229 = scalar_lea.vmem [#allocation3], %s228
        // Predicated region
        $region33: #{tpu_custom_call.1} parent=31 // pred_check
          %p230 = pneg %p56
        $region34: #{tpu_custom_call.1} parent=31 // pred_check_branch
          %232 = sbr.rel (%p230) target = $region36
        $region35: #{tpu_custom_call.1} parent=31 // pred_region
          %234 = dma.done %s226, 2048
        $region36: #{tpu_custom_call.1} parent=31 // pred_fallthru
          _
        %s235 = sand.u32 %s23, 1
        %s236 = scalar_lea.sflag [#allocation7], %s235
        %s237 = sand.u32 %s69, 1
        %s238 = smul.addr %s237, 512
        %s239 = scalar_lea.vmem [#allocation6], %s238
        // Predicated region
        $region37: #{tpu_custom_call.1} parent=31 // pred_check
          %p240 = pneg %p82
        $region38: #{tpu_custom_call.1} parent=31 // pred_check_branch
          %242 = sbr.rel (%p240) target = $region40
        $region39: #{tpu_custom_call.1} parent=31 // pred_region
          %244 = dma.done %s236, 8192
        $region40: #{tpu_custom_call.1} parent=31 // pred_fallthru
          _
        %s245 = sand.u32 %s23, 1
        %s246 = scalar_lea.sflag [#allocation7], %s245
        %s247 = sand.u32 %s95, 1
        %s248 = smul.addr %s247, 4
        %s249 = scalar_lea.vmem [#allocation8], %s248
        // Predicated region
        $region41: #{tpu_custom_call.1} parent=31 // pred_check
          %p250 = pneg %p108
        $region42: #{tpu_custom_call.1} parent=31 // pred_check_branch
          %252 = sbr.rel (%p250) target = $region44
        $region43: #{tpu_custom_call.1} parent=31 // pred_region
          %254 = dma.done %s246, 64
        $region44: #{tpu_custom_call.1} parent=31 // pred_fallthru
          _
        %s255 = sand.u32 %s43, 1
        %s256 = scalar_lea.sflag [#allocation4], %s255
        %s257 = sand.u32 %s43, 1
        %s258 = smul.addr %s257, 128
        %s259 = scalar_lea.vmem [#allocation3], %s258
        %p260 = pneg %p56
        %p261 = pneg %p53
        %s262 = sand.u32 %s23, 1
        %s263 = scalar_lea.sflag [#allocation7], %s262
        %s264 = sand.u32 %s69, 1
        %s265 = smul.addr %s264, 512
        %s266 = scalar_lea.vmem [#allocation6], %s265
        %p267 = pneg %p82
        %p268 = pneg %p79
        %s269 = sand.u32 %s23, 1
        %s270 = scalar_lea.sflag [#allocation7], %s269
        %s271 = sand.u32 %s95, 1
        %s272 = smul.addr %s271, 4
        %s273 = scalar_lea.vmem [#allocation8], %s272
        %p274 = pneg %p108
        %p275 = pneg %p105
        %p276 = pneg %p136
        %p277 = pneg %p133
        %s278 = sand.u32 %s123, 1
        %s279 = scalar_lea.sflag [#allocation5], %s278
        %s280 = sand.u32 %s123, 1
        %s281 = smul.addr %s280, 128
        %s282 = scalar_lea.vmem [#allocation9], %s281
        %s283 = smul.u32 16, %s27
        %s284 = smul.u32 4, %s28
        %s285 = smul.u32 4, %s28
        %s286 = smul.u32 16, %s27
        %v287 = vld [vmem:[%s229] sm:$0xff]
        %v288 = vld [vmem:[%s229 + $0x8] sm:$0xff]
        %v289 = vld [vmem:[%s229 + $0x10] sm:$0xff]
        %v290 = vld [vmem:[%s229 + $0x18] sm:$0xff]
        %v291 = vld [vmem:[%s229 + $0x20] sm:$0xff]
        %v292 = vld [vmem:[%s229 + $0x28] sm:$0xff]
        %v293 = vld [vmem:[%s229 + $0x30] sm:$0xff]
        %v294 = vld [vmem:[%s229 + $0x38] sm:$0xff]
        %v295 = vld [vmem:[%s229 + $0x40] sm:$0xff]
        %v296 = vld [vmem:[%s229 + $0x48] sm:$0xff]
        %v297 = vld [vmem:[%s229 + $0x50] sm:$0xff]
        %v298 = vld [vmem:[%s229 + $0x58] sm:$0xff]
        %v299 = vld [vmem:[%s229 + $0x60] sm:$0xff]
        %v300 = vld [vmem:[%s229 + $0x68] sm:$0xff]
        %v301 = vld [vmem:[%s229 + $0x70] sm:$0xff]
        %v302 = vld [vmem:[%s229 + $0x78] sm:$0xff]
        %v303 = vld [vmem:[%s239] sm:$0xff]
        %v304 = vld [vmem:[%s239 + $0x8] sm:$0xff]
        %v305 = vld [vmem:[%s239 + $0x10] sm:$0xff]
        %v306 = vld [vmem:[%s239 + $0x18] sm:$0xff]
        %v307 = vld [vmem:[%s239 + $0x20] sm:$0xff]
        %v308 = vld [vmem:[%s239 + $0x28] sm:$0xff]
        %v309 = vld [vmem:[%s239 + $0x30] sm:$0xff]
        %v310 = vld [vmem:[%s239 + $0x38] sm:$0xff]
        %v311 = vld [vmem:[%s239 + $0x40] sm:$0xff]
        %v312 = vld [vmem:[%s239 + $0x48] sm:$0xff]
        %v313 = vld [vmem:[%s239 + $0x50] sm:$0xff]
        %v314 = vld [vmem:[%s239 + $0x58] sm:$0xff]
        %v315 = vld [vmem:[%s239 + $0x60] sm:$0xff]
        %v316 = vld [vmem:[%s239 + $0x68] sm:$0xff]
        %v317 = vld [vmem:[%s239 + $0x70] sm:$0xff]
        %v318 = vld [vmem:[%s239 + $0x78] sm:$0xff]
        %v319 = vld [vmem:[%s239 + $0x80] sm:$0xff]
        %v320 = vld [vmem:[%s239 + $0x88] sm:$0xff]
        %v321 = vld [vmem:[%s239 + $0x90] sm:$0xff]
        %v322 = vld [vmem:[%s239 + $0x98] sm:$0xff]
        %v323 = vld [vmem:[%s239 + $0xa0] sm:$0xff]
        %v324 = vld [vmem:[%s239 + $0xa8] sm:$0xff]
        %v325 = vld [vmem:[%s239 + $0xb0] sm:$0xff]
        %v326 = vld [vmem:[%s239 + $0xb8] sm:$0xff]
        %v327 = vld [vmem:[%s239 + $0xc0] sm:$0xff]
        %v328 = vld [vmem:[%s239 + $0xc8] sm:$0xff]
        %v329 = vld [vmem:[%s239 + $0xd0] sm:$0xff]
        %v330 = vld [vmem:[%s239 + $0xd8] sm:$0xff]
        %v331 = vld [vmem:[%s239 + $0xe0] sm:$0xff]
        %v332 = vld [vmem:[%s239 + $0xe8] sm:$0xff]
        %v333 = vld [vmem:[%s239 + $0xf0] sm:$0xff]
        %v334 = vld [vmem:[%s239 + $0xf8] sm:$0xff]
        %v335 = vld [vmem:[%s239 + $0x100] sm:$0xff]
        %v336 = vld [vmem:[%s239 + $0x108] sm:$0xff]
        %v337 = vld [vmem:[%s239 + $0x110] sm:$0xff]
        %v338 = vld [vmem:[%s239 + $0x118] sm:$0xff]
        %v339 = vld [vmem:[%s239 + $0x120] sm:$0xff]
        %v340 = vld [vmem:[%s239 + $0x128] sm:$0xff]
        %v341 = vld [vmem:[%s239 + $0x130] sm:$0xff]
        %v342 = vld [vmem:[%s239 + $0x138] sm:$0xff]
        %v343 = vld [vmem:[%s239 + $0x140] sm:$0xff]
        %v344 = vld [vmem:[%s239 + $0x148] sm:$0xff]
        %v345 = vld [vmem:[%s239 + $0x150] sm:$0xff]
        %v346 = vld [vmem:[%s239 + $0x158] sm:$0xff]
        %v347 = vld [vmem:[%s239 + $0x160] sm:$0xff]
        %v348 = vld [vmem:[%s239 + $0x168] sm:$0xff]
        %v349 = vld [vmem:[%s239 + $0x170] sm:$0xff]
        %v350 = vld [vmem:[%s239 + $0x178] sm:$0xff]
        %v351 = vld [vmem:[%s239 + $0x180] sm:$0xff]
        %v352 = vld [vmem:[%s239 + $0x188] sm:$0xff]
        %v353 = vld [vmem:[%s239 + $0x190] sm:$0xff]
        %v354 = vld [vmem:[%s239 + $0x198] sm:$0xff]
        %v355 = vld [vmem:[%s239 + $0x1a0] sm:$0xff]
        %v356 = vld [vmem:[%s239 + $0x1a8] sm:$0xff]
        %v357 = vld [vmem:[%s239 + $0x1b0] sm:$0xff]
        %v358 = vld [vmem:[%s239 + $0x1b8] sm:$0xff]
        %v359 = vld [vmem:[%s239 + $0x1c0] sm:$0xff]
        %v360 = vld [vmem:[%s239 + $0x1c8] sm:$0xff]
        %v361 = vld [vmem:[%s239 + $0x1d0] sm:$0xff]
        %v362 = vld [vmem:[%s239 + $0x1d8] sm:$0xff]
        %v363 = vld [vmem:[%s239 + $0x1e0] sm:$0xff]
        %v364 = vld [vmem:[%s239 + $0x1e8] sm:$0xff]
        %v365 = vld [vmem:[%s239 + $0x1f0] sm:$0xff]
        %v366 = vld [vmem:[%s239 + $0x1f8] sm:$0xff]
        %v367 = vld [vmem:[%s249] sm:$0xf]
        %v369 = vperm.slane %v367, 0
        %v370 = vperm.slane %v367, 1
        %v371 = vperm.slane %v367, 2
        %v372 = vperm.slane %v367, 3
        %377 = vmatpush.msra.mxu0 %v363
        %378 = vmatpush.msra.mxu0 %v359
        %379 = vmatpush.msra.mxu0 %v355
        %380 = vmatpush.msra.mxu0 %v351
        %381 = vmatpush.msra.mxu0 %v347
        %382 = vmatpush.msra.mxu0 %v343
        %383 = vmatpush.msra.mxu0 %v339
        %384 = vmatpush.msra.mxu0 %v335
        %385 = vmatpush.msra.mxu0 %v331
        %386 = vmatpush.msra.mxu0 %v327
        %387 = vmatpush.msra.mxu0 %v323
        %388 = vmatpush.msra.mxu0 %v319
        %389 = vmatpush.msra.mxu0 %v315
        %390 = vmatpush.msra.mxu0 %v311
        %391 = vmatpush.msra.mxu0 %v307
        %392 = vmatpush.msra.mxu0 %v303
        %393 = vmatmul.f32.gmra.mxu0 %v287
        %v394 = vpop.f32.mrf.mxu0
        %v395 = vadd.f32 %v369, %v394
        %396 = vmatmul.f32.gmra.mxu0 %v288
        %v397 = vpop.f32.mrf.mxu0
        %v398 = vadd.f32 %v369, %v397
        %399 = vmatmul.f32.gmra.mxu0 %v289
        %v400 = vpop.f32.mrf.mxu0
        %v401 = vadd.f32 %v369, %v400
        %402 = vmatmul.f32.gmra.mxu0 %v290
        %v403 = vpop.f32.mrf.mxu0
        %v404 = vadd.f32 %v369, %v403
        %405 = vmatmul.f32.gmra.mxu0 %v291
        %v406 = vpop.f32.mrf.mxu0
        %v407 = vadd.f32 %v369, %v406
        %408 = vmatmul.f32.gmra.mxu0 %v292
        %v409 = vpop.f32.mrf.mxu0
        %v410 = vadd.f32 %v369, %v409
        %411 = vmatmul.f32.gmra.mxu0 %v293
        %v412 = vpop.f32.mrf.mxu0
        %v413 = vadd.f32 %v369, %v412
        %414 = vmatmul.f32.gmra.mxu0 %v294
        %v415 = vpop.f32.mrf.mxu0
        %v416 = vadd.f32 %v369, %v415
        %417 = vmatmul.f32.gmra.mxu0 %v295
        %v418 = vpop.f32.mrf.mxu0
        %v419 = vadd.f32 %v369, %v418
        %420 = vmatmul.f32.gmra.mxu0 %v296
        %v421 = vpop.f32.mrf.mxu0
        %v422 = vadd.f32 %v369, %v421
        %423 = vmatmul.f32.gmra.mxu0 %v297
        %v424 = vpop.f32.mrf.mxu0
        %v425 = vadd.f32 %v369, %v424
        %426 = vmatmul.f32.gmra.mxu0 %v298
        %v427 = vpop.f32.mrf.mxu0
        %v428 = vadd.f32 %v369, %v427
        %429 = vmatmul.f32.gmra.mxu0 %v299
        %v430 = vpop.f32.mrf.mxu0
        %v431 = vadd.f32 %v369, %v430
        %432 = vmatmul.f32.gmra.mxu0 %v300
        %v433 = vpop.f32.mrf.mxu0
        %v434 = vadd.f32 %v369, %v433
        %435 = vmatmul.f32.gmra.mxu0 %v301
        %v436 = vpop.f32.mrf.mxu0
        %v437 = vadd.f32 %v369, %v436
        %438 = vmatmul.f32.gmra.mxu0 %v302
        %v439 = vpop.f32.mrf.mxu0
        %v440 = vadd.f32 %v369, %v439
        %441 = vdwg.mxu0
        %442 = vmatpush.msra.mxu0 %v364
        %443 = vmatpush.msra.mxu0 %v360
        %444 = vmatpush.msra.mxu0 %v356
        %445 = vmatpush.msra.mxu0 %v352
        %446 = vmatpush.msra.mxu0 %v348
        %447 = vmatpush.msra.mxu0 %v344
        %448 = vmatpush.msra.mxu0 %v340
        %449 = vmatpush.msra.mxu0 %v336
        %450 = vmatpush.msra.mxu0 %v332
        %451 = vmatpush.msra.mxu0 %v328
        %452 = vmatpush.msra.mxu0 %v324
        %453 = vmatpush.msra.mxu0 %v320
        %454 = vmatpush.msra.mxu0 %v316
        %455 = vmatpush.msra.mxu0 %v312
        %456 = vmatpush.msra.mxu0 %v308
        %457 = vmatpush.msra.mxu0 %v304
        %458 = vmatmul.f32.gmra.mxu0 %v287
        %v459 = vpop.f32.mrf.mxu0
        %v460 = vadd.f32 %v370, %v459
        %461 = vmatmul.f32.gmra.mxu0 %v288
        %v462 = vpop.f32.mrf.mxu0
        %v463 = vadd.f32 %v370, %v462
        %464 = vmatmul.f32.gmra.mxu0 %v289
        %v465 = vpop.f32.mrf.mxu0
        %v466 = vadd.f32 %v370, %v465
        %467 = vmatmul.f32.gmra.mxu0 %v290
        %v468 = vpop.f32.mrf.mxu0
        %v469 = vadd.f32 %v370, %v468
        %470 = vmatmul.f32.gmra.mxu0 %v291
        %v471 = vpop.f32.mrf.mxu0
        %v472 = vadd.f32 %v370, %v471
        %473 = vmatmul.f32.gmra.mxu0 %v292
        %v474 = vpop.f32.mrf.mxu0
        %v475 = vadd.f32 %v370, %v474
        %476 = vmatmul.f32.gmra.mxu0 %v293
        %v477 = vpop.f32.mrf.mxu0
        %v478 = vadd.f32 %v370, %v477
        %479 = vmatmul.f32.gmra.mxu0 %v294
        %v480 = vpop.f32.mrf.mxu0
        %v481 = vadd.f32 %v370, %v480
        %482 = vmatmul.f32.gmra.mxu0 %v295
        %v483 = vpop.f32.mrf.mxu0
        %v484 = vadd.f32 %v370, %v483
        %485 = vmatmul.f32.gmra.mxu0 %v296
        %v486 = vpop.f32.mrf.mxu0
        %v487 = vadd.f32 %v370, %v486
        %488 = vmatmul.f32.gmra.mxu0 %v297
        %v489 = vpop.f32.mrf.mxu0
        %v490 = vadd.f32 %v370, %v489
        %491 = vmatmul.f32.gmra.mxu0 %v298
        %v492 = vpop.f32.mrf.mxu0
        %v493 = vadd.f32 %v370, %v492
        %494 = vmatmul.f32.gmra.mxu0 %v299
        %v495 = vpop.f32.mrf.mxu0
        %v496 = vadd.f32 %v370, %v495
        %497 = vmatmul.f32.gmra.mxu0 %v300
        %v498 = vpop.f32.mrf.mxu0
        %v499 = vadd.f32 %v370, %v498
        %500 = vmatmul.f32.gmra.mxu0 %v301
        %v501 = vpop.f32.mrf.mxu0
        %v502 = vadd.f32 %v370, %v501
        %503 = vmatmul.f32.gmra.mxu0 %v302
        %v504 = vpop.f32.mrf.mxu0
        %v505 = vadd.f32 %v370, %v504
        %506 = vdwg.mxu0
        %507 = vmatpush.msra.mxu0 %v365
        %508 = vmatpush.msra.mxu0 %v361
        %509 = vmatpush.msra.mxu0 %v357
        %510 = vmatpush.msra.mxu0 %v353
        %511 = vmatpush.msra.mxu0 %v349
        %512 = vmatpush.msra.mxu0 %v345
        %513 = vmatpush.msra.mxu0 %v341
        %514 = vmatpush.msra.mxu0 %v337
        %515 = vmatpush.msra.mxu0 %v333
        %516 = vmatpush.msra.mxu0 %v329
        %517 = vmatpush.msra.mxu0 %v325
        %518 = vmatpush.msra.mxu0 %v321
        %519 = vmatpush.msra.mxu0 %v317
        %520 = vmatpush.msra.mxu0 %v313
        %521 = vmatpush.msra.mxu0 %v309
        %522 = vmatpush.msra.mxu0 %v305
        %523 = vmatmul.f32.gmra.mxu0 %v287
        %v524 = vpop.f32.mrf.mxu0
        %v525 = vadd.f32 %v371, %v524
        %526 = vmatmul.f32.gmra.mxu0 %v288
        %v527 = vpop.f32.mrf.mxu0
        %v528 = vadd.f32 %v371, %v527
        %529 = vmatmul.f32.gmra.mxu0 %v289
        %v530 = vpop.f32.mrf.mxu0
        %v531 = vadd.f32 %v371, %v530
        %532 = vmatmul.f32.gmra.mxu0 %v290
        %v533 = vpop.f32.mrf.mxu0
        %v534 = vadd.f32 %v371, %v533
        %535 = vmatmul.f32.gmra.mxu0 %v291
        %v536 = vpop.f32.mrf.mxu0
        %v537 = vadd.f32 %v371, %v536
        %538 = vmatmul.f32.gmra.mxu0 %v292
        %v539 = vpop.f32.mrf.mxu0
        %v540 = vadd.f32 %v371, %v539
        %541 = vmatmul.f32.gmra.mxu0 %v293
        %v542 = vpop.f32.mrf.mxu0
        %v543 = vadd.f32 %v371, %v542
        %544 = vmatmul.f32.gmra.mxu0 %v294
        %v545 = vpop.f32.mrf.mxu0
        %v546 = vadd.f32 %v371, %v545
        %547 = vmatmul.f32.gmra.mxu0 %v295
        %v548 = vpop.f32.mrf.mxu0
        %v549 = vadd.f32 %v371, %v548
        %550 = vmatmul.f32.gmra.mxu0 %v296
        %v551 = vpop.f32.mrf.mxu0
        %v552 = vadd.f32 %v371, %v551
        %553 = vmatmul.f32.gmra.mxu0 %v297
        %v554 = vpop.f32.mrf.mxu0
        %v555 = vadd.f32 %v371, %v554
        %556 = vmatmul.f32.gmra.mxu0 %v298
        %v557 = vpop.f32.mrf.mxu0
        %v558 = vadd.f32 %v371, %v557
        %559 = vmatmul.f32.gmra.mxu0 %v299
        %v560 = vpop.f32.mrf.mxu0
        %v561 = vadd.f32 %v371, %v560
        %562 = vmatmul.f32.gmra.mxu0 %v300
        %v563 = vpop.f32.mrf.mxu0
        %v564 = vadd.f32 %v371, %v563
        %565 = vmatmul.f32.gmra.mxu0 %v301
        %v566 = vpop.f32.mrf.mxu0
        %v567 = vadd.f32 %v371, %v566
        %568 = vmatmul.f32.gmra.mxu0 %v302
        %v569 = vpop.f32.mrf.mxu0
        %v570 = vadd.f32 %v371, %v569
        %571 = vdwg.mxu0
        %572 = vmatpush.msra.mxu0 %v366
        %573 = vmatpush.msra.mxu0 %v362
        %574 = vmatpush.msra.mxu0 %v358
        %575 = vmatpush.msra.mxu0 %v354
        %576 = vmatpush.msra.mxu0 %v350
        %577 = vmatpush.msra.mxu0 %v346
        %578 = vmatpush.msra.mxu0 %v342
        %579 = vmatpush.msra.mxu0 %v338
        %580 = vmatpush.msra.mxu0 %v334
        %581 = vmatpush.msra.mxu0 %v330
        %582 = vmatpush.msra.mxu0 %v326
        %583 = vmatpush.msra.mxu0 %v322
        %584 = vmatpush.msra.mxu0 %v318
        %585 = vmatpush.msra.mxu0 %v314
        %586 = vmatpush.msra.mxu0 %v310
        %587 = vmatpush.msra.mxu0 %v306
        %588 = vmatmul.f32.gmra.mxu0 %v287
        %v589 = vpop.f32.mrf.mxu0
        %v590 = vadd.f32 %v372, %v589
        %591 = vmatmul.f32.gmra.mxu0 %v288
        %v592 = vpop.f32.mrf.mxu0
        %v593 = vadd.f32 %v372, %v592
        %594 = vmatmul.f32.gmra.mxu0 %v289
        %v595 = vpop.f32.mrf.mxu0
        %v596 = vadd.f32 %v372, %v595
        %597 = vmatmul.f32.gmra.mxu0 %v290
        %v598 = vpop.f32.mrf.mxu0
        %v599 = vadd.f32 %v372, %v598
        %600 = vmatmul.f32.gmra.mxu0 %v291
        %v601 = vpop.f32.mrf.mxu0
        %v602 = vadd.f32 %v372, %v601
        %603 = vmatmul.f32.gmra.mxu0 %v292
        %v604 = vpop.f32.mrf.mxu0
        %v605 = vadd.f32 %v372, %v604
        %606 = vmatmul.f32.gmra.mxu0 %v293
        %v607 = vpop.f32.mrf.mxu0
        %v608 = vadd.f32 %v372, %v607
        %609 = vmatmul.f32.gmra.mxu0 %v294
        %v610 = vpop.f32.mrf.mxu0
        %v611 = vadd.f32 %v372, %v610
        %612 = vmatmul.f32.gmra.mxu0 %v295
        %v613 = vpop.f32.mrf.mxu0
        %v614 = vadd.f32 %v372, %v613
        %615 = vmatmul.f32.gmra.mxu0 %v296
        %v616 = vpop.f32.mrf.mxu0
        %v617 = vadd.f32 %v372, %v616
        %618 = vmatmul.f32.gmra.mxu0 %v297
        %v619 = vpop.f32.mrf.mxu0
        %v620 = vadd.f32 %v372, %v619
        %621 = vmatmul.f32.gmra.mxu0 %v298
        %v622 = vpop.f32.mrf.mxu0
        %v623 = vadd.f32 %v372, %v622
        %624 = vmatmul.f32.gmra.mxu0 %v299
        %v625 = vpop.f32.mrf.mxu0
        %v626 = vadd.f32 %v372, %v625
        %627 = vmatmul.f32.gmra.mxu0 %v300
        %v628 = vpop.f32.mrf.mxu0
        %v629 = vadd.f32 %v372, %v628
        %630 = vmatmul.f32.gmra.mxu0 %v301
        %v631 = vpop.f32.mrf.mxu0
        %v632 = vadd.f32 %v372, %v631
        %633 = vmatmul.f32.gmra.mxu0 %v302
        %v634 = vpop.f32.mrf.mxu0
        %v635 = vadd.f32 %v372, %v634
        %636 = vdwg.mxu0
        %637 = vst [vmem:[#allocation2] sm:$0xff] %v395
        %638 = vst [vmem:[#allocation2 + $0x8] sm:$0xff] %v460
        %639 = vst [vmem:[#allocation2 + $0x10] sm:$0xff] %v525
        %640 = vst [vmem:[#allocation2 + $0x18] sm:$0xff] %v590
        %641 = vst [vmem:[#allocation2 + $0x20] sm:$0xff] %v398
        %642 = vst [vmem:[#allocation2 + $0x28] sm:$0xff] %v463
        %643 = vst [vmem:[#allocation2 + $0x30] sm:$0xff] %v528
        %644 = vst [vmem:[#allocation2 + $0x38] sm:$0xff] %v593
        %645 = vst [vmem:[#allocation2 + $0x40] sm:$0xff] %v401
        %646 = vst [vmem:[#allocation2 + $0x48] sm:$0xff] %v466
        %647 = vst [vmem:[#allocation2 + $0x50] sm:$0xff] %v531
        %648 = vst [vmem:[#allocation2 + $0x58] sm:$0xff] %v596
        %649 = vst [vmem:[#allocation2 + $0x60] sm:$0xff] %v404
        %650 = vst [vmem:[#allocation2 + $0x68] sm:$0xff] %v469
        %651 = vst [vmem:[#allocation2 + $0x70] sm:$0xff] %v534
        %652 = vst [vmem:[#allocation2 + $0x78] sm:$0xff] %v599
        %653 = vst [vmem:[#allocation2 + $0x80] sm:$0xff] %v407
        %654 = vst [vmem:[#allocation2 + $0x88] sm:$0xff] %v472
        %655 = vst [vmem:[#allocation2 + $0x90] sm:$0xff] %v537
        %656 = vst [vmem:[#allocation2 + $0x98] sm:$0xff] %v602
        %657 = vst [vmem:[#allocation2 + $0xa0] sm:$0xff] %v410
        %658 = vst [vmem:[#allocation2 + $0xa8] sm:$0xff] %v475
        %659 = vst [vmem:[#allocation2 + $0xb0] sm:$0xff] %v540
        %660 = vst [vmem:[#allocation2 + $0xb8] sm:$0xff] %v605
        %661 = vst [vmem:[#allocation2 + $0xc0] sm:$0xff] %v413
        %662 = vst [vmem:[#allocation2 + $0xc8] sm:$0xff] %v478
        %663 = vst [vmem:[#allocation2 + $0xd0] sm:$0xff] %v543
        %664 = vst [vmem:[#allocation2 + $0xd8] sm:$0xff] %v608
        %665 = vst [vmem:[#allocation2 + $0xe0] sm:$0xff] %v416
        %666 = vst [vmem:[#allocation2 + $0xe8] sm:$0xff] %v481
        %667 = vst [vmem:[#allocation2 + $0xf0] sm:$0xff] %v546
        %668 = vst [vmem:[#allocation2 + $0xf8] sm:$0xff] %v611
        %669 = vst [vmem:[#allocation2 + $0x100] sm:$0xff] %v419
        %670 = vst [vmem:[#allocation2 + $0x108] sm:$0xff] %v484
        %671 = vst [vmem:[#allocation2 + $0x110] sm:$0xff] %v549
        %672 = vst [vmem:[#allocation2 + $0x118] sm:$0xff] %v614
        %673 = vst [vmem:[#allocation2 + $0x120] sm:$0xff] %v422
        %674 = vst [vmem:[#allocation2 + $0x128] sm:$0xff] %v487
        %675 = vst [vmem:[#allocation2 + $0x130] sm:$0xff] %v552
        %676 = vst [vmem:[#allocation2 + $0x138] sm:$0xff] %v617
        %677 = vst [vmem:[#allocation2 + $0x140] sm:$0xff] %v425
        %678 = vst [vmem:[#allocation2 + $0x148] sm:$0xff] %v490
        %679 = vst [vmem:[#allocation2 + $0x150] sm:$0xff] %v555
        %680 = vst [vmem:[#allocation2 + $0x158] sm:$0xff] %v620
        %681 = vst [vmem:[#allocation2 + $0x160] sm:$0xff] %v428
        %682 = vst [vmem:[#allocation2 + $0x168] sm:$0xff] %v493
        %683 = vst [vmem:[#allocation2 + $0x170] sm:$0xff] %v558
        %684 = vst [vmem:[#allocation2 + $0x178] sm:$0xff] %v623
        %685 = vst [vmem:[#allocation2 + $0x180] sm:$0xff] %v431
        %686 = vst [vmem:[#allocation2 + $0x188] sm:$0xff] %v496
        %687 = vst [vmem:[#allocation2 + $0x190] sm:$0xff] %v561
        %688 = vst [vmem:[#allocation2 + $0x198] sm:$0xff] %v626
        %689 = vst [vmem:[#allocation2 + $0x1a0] sm:$0xff] %v434
        %690 = vst [vmem:[#allocation2 + $0x1a8] sm:$0xff] %v499
        %691 = vst [vmem:[#allocation2 + $0x1b0] sm:$0xff] %v564
        %692 = vst [vmem:[#allocation2 + $0x1b8] sm:$0xff] %v629
        %693 = vst [vmem:[#allocation2 + $0x1c0] sm:$0xff] %v437
        %694 = vst [vmem:[#allocation2 + $0x1c8] sm:$0xff] %v502
        %695 = vst [vmem:[#allocation2 + $0x1d0] sm:$0xff] %v567
        %696 = vst [vmem:[#allocation2 + $0x1d8] sm:$0xff] %v632
        %697 = vst [vmem:[#allocation2 + $0x1e0] sm:$0xff] %v440
        %698 = vst [vmem:[#allocation2 + $0x1e8] sm:$0xff] %v505
        %699 = vst [vmem:[#allocation2 + $0x1f0] sm:$0xff] %v570
        %700 = vst [vmem:[#allocation2 + $0x1f8] sm:$0xff] %v635
        %s701 = smul.u32 0, 4
        %s702 = smul.addr %s701, 8
        %s703 = scalar_lea.vmem [#allocation2], %s702
        %v704 = vld [vmem:[%s703] sm:$0xff]
        %v705 = vld [vmem:[%s703 + $0x20] sm:$0xff]
        %v706 = vld [vmem:[%s703 + $0x40] sm:$0xff]
        %v707 = vld [vmem:[%s703 + $0x60] sm:$0xff]
        %v708 = vld [vmem:[%s703 + $0x80] sm:$0xff]
        %v709 = vld [vmem:[%s703 + $0xa0] sm:$0xff]
        %v710 = vld [vmem:[%s703 + $0xc0] sm:$0xff]
        %v711 = vld [vmem:[%s703 + $0xe0] sm:$0xff]
        %v712 = vsub.f32 0.0, %v704
        %v713 = vsub.f32 0.0, %v705
        %v714 = vsub.f32 0.0, %v706
        %v715 = vsub.f32 0.0, %v707
        %v716 = vsub.f32 0.0, %v708
        %v717 = vsub.f32 0.0, %v709
        %v718 = vsub.f32 0.0, %v710
        %v719 = vsub.f32 0.0, %v711
        %v720 = vmul.f32 %v712, 1.442695
        %v721 = vpow.pop %v720
        %v722 = vmul.f32 %v713, 1.442695
        %v723 = vpow.pop %v722
        %v724 = vmul.f32 %v714, 1.442695
        %v725 = vpow.pop %v724
        %v726 = vmul.f32 %v715, 1.442695
        %v727 = vpow.pop %v726
        %v728 = vmul.f32 %v716, 1.442695
        %v729 = vpow.pop %v728
        %v730 = vmul.f32 %v717, 1.442695
        %v731 = vpow.pop %v730
        %v732 = vmul.f32 %v718, 1.442695
        %v733 = vpow.pop %v732
        %v734 = vmul.f32 %v719, 1.442695
        %v735 = vpow.pop %v734
        %v736 = vadd.f32 %v721, 1.0
        %v737 = vadd.f32 %v723, 1.0
        %v738 = vadd.f32 %v725, 1.0
        %v739 = vadd.f32 %v727, 1.0
        %v740 = vadd.f32 %v729, 1.0
        %v741 = vadd.f32 %v731, 1.0
        %v742 = vadd.f32 %v733, 1.0
        %v743 = vadd.f32 %v735, 1.0
        %v744 = vrcp.pop %v736
        %v745 = vmul.f32 %v736, %v744
        %v746 = vsub.f32 1.0, %v745
        %v747 = vmul.f32 %v744, %v746
        %v748 = vadd.f32 %v744, %v747
        %vm749 = vweird.f32 %v736
        %vm750 = vweird.f32 %v744
        %vm751 = vmor %vm749, %vm750
        %v752 = vsel %vm751, %v744, %v748
        %v753 = vand.u32 2147483647, %v736
        %vm754 = vcmp.eq.f32.partialorder %v753, 8.507059e+37
        %v755 = vand.u32 %v736, 2147483648
        %v756 = vor.u32 1.1754944e-38, %v755
        %v757 = vsel %vm754, %v756, %v752
        %v758 = vmul.f32 1.0, %v757
        %v759 = vrcp.pop %v737
        %v760 = vmul.f32 %v737, %v759
        %v761 = vsub.f32 1.0, %v760
        %v762 = vmul.f32 %v759, %v761
        %v763 = vadd.f32 %v759, %v762
        %vm764 = vweird.f32 %v737
        %vm765 = vweird.f32 %v759
        %vm766 = vmor %vm764, %vm765
        %v767 = vsel %vm766, %v759, %v763
        %v768 = vand.u32 2147483647, %v737
        %vm769 = vcmp.eq.f32.partialorder %v768, 8.507059e+37
        %v770 = vand.u32 %v737, 2147483648
        %v771 = vor.u32 1.1754944e-38, %v770
        %v772 = vsel %vm769, %v771, %v767
        %v773 = vmul.f32 1.0, %v772
        %v774 = vrcp.pop %v738
        %v775 = vmul.f32 %v738, %v774
        %v776 = vsub.f32 1.0, %v775
        %v777 = vmul.f32 %v774, %v776
        %v778 = vadd.f32 %v774, %v777
        %vm779 = vweird.f32 %v738
        %vm780 = vweird.f32 %v774
        %vm781 = vmor %vm779, %vm780
        %v782 = vsel %vm781, %v774, %v778
        %v783 = vand.u32 2147483647, %v738
        %vm784 = vcmp.eq.f32.partialorder %v783, 8.507059e+37
        %v785 = vand.u32 %v738, 2147483648
        %v786 = vor.u32 1.1754944e-38, %v785
        %v787 = vsel %vm784, %v786, %v782
        %v788 = vmul.f32 1.0, %v787
        %v789 = vrcp.pop %v739
        %v790 = vmul.f32 %v739, %v789
        %v791 = vsub.f32 1.0, %v790
        %v792 = vmul.f32 %v789, %v791
        %v793 = vadd.f32 %v789, %v792
        %vm794 = vweird.f32 %v739
        %vm795 = vweird.f32 %v789
        %vm796 = vmor %vm794, %vm795
        %v797 = vsel %vm796, %v789, %v793
        %v798 = vand.u32 2147483647, %v739
        %vm799 = vcmp.eq.f32.partialorder %v798, 8.507059e+37
        %v800 = vand.u32 %v739, 2147483648
        %v801 = vor.u32 1.1754944e-38, %v800
        %v802 = vsel %vm799, %v801, %v797
        %v803 = vmul.f32 1.0, %v802
        %v804 = vrcp.pop %v740
        %v805 = vmul.f32 %v740, %v804
        %v806 = vsub.f32 1.0, %v805
        %v807 = vmul.f32 %v804, %v806
        %v808 = vadd.f32 %v804, %v807
        %vm809 = vweird.f32 %v740
        %vm810 = vweird.f32 %v804
        %vm811 = vmor %vm809, %vm810
        %v812 = vsel %vm811, %v804, %v808
        %v813 = vand.u32 2147483647, %v740
        %vm814 = vcmp.eq.f32.partialorder %v813, 8.507059e+37
        %v815 = vand.u32 %v740, 2147483648
        %v816 = vor.u32 1.1754944e-38, %v815
        %v817 = vsel %vm814, %v816, %v812
        %v818 = vmul.f32 1.0, %v817
        %v819 = vrcp.pop %v741
        %v820 = vmul.f32 %v741, %v819
        %v821 = vsub.f32 1.0, %v820
        %v822 = vmul.f32 %v819, %v821
        %v823 = vadd.f32 %v819, %v822
        %vm824 = vweird.f32 %v741
        %vm825 = vweird.f32 %v819
        %vm826 = vmor %vm824, %vm825
        %v827 = vsel %vm826, %v819, %v823
        %v828 = vand.u32 2147483647, %v741
        %vm829 = vcmp.eq.f32.partialorder %v828, 8.507059e+37
        %v830 = vand.u32 %v741, 2147483648
        %v831 = vor.u32 1.1754944e-38, %v830
        %v832 = vsel %vm829, %v831, %v827
        %v833 = vmul.f32 1.0, %v832
        %v834 = vrcp.pop %v742
        %v835 = vmul.f32 %v742, %v834
        %v836 = vsub.f32 1.0, %v835
        %v837 = vmul.f32 %v834, %v836
        %v838 = vadd.f32 %v834, %v837
        %vm839 = vweird.f32 %v742
        %vm840 = vweird.f32 %v834
        %vm841 = vmor %vm839, %vm840
        %v842 = vsel %vm841, %v834, %v838
        %v843 = vand.u32 2147483647, %v742
        %vm844 = vcmp.eq.f32.partialorder %v843, 8.507059e+37
        %v845 = vand.u32 %v742, 2147483648
        %v846 = vor.u32 1.1754944e-38, %v845
        %v847 = vsel %vm844, %v846, %v842
        %v848 = vmul.f32 1.0, %v847
        %v849 = vrcp.pop %v743
        %v850 = vmul.f32 %v743, %v849
        %v851 = vsub.f32 1.0, %v850
        %v852 = vmul.f32 %v849, %v851
        %v853 = vadd.f32 %v849, %v852
        %vm854 = vweird.f32 %v743
        %vm855 = vweird.f32 %v849
        %vm856 = vmor %vm854, %vm855
        %v857 = vsel %vm856, %v849, %v853
        %v858 = vand.u32 2147483647, %v743
        %vm859 = vcmp.eq.f32.partialorder %v858, 8.507059e+37
        %v860 = vand.u32 %v743, 2147483648
        %v861 = vor.u32 1.1754944e-38, %v860
        %v862 = vsel %vm859, %v861, %v857
        %v863 = vmul.f32 1.0, %v862
        %v864 = vld [vmem:[%s703 + $0x8] sm:$0xff]
        %v865 = vld [vmem:[%s703 + $0x28] sm:$0xff]
        %v866 = vld [vmem:[%s703 + $0x48] sm:$0xff]
        %v867 = vld [vmem:[%s703 + $0x68] sm:$0xff]
        %v868 = vld [vmem:[%s703 + $0x88] sm:$0xff]
        %v869 = vld [vmem:[%s703 + $0xa8] sm:$0xff]
        %v870 = vld [vmem:[%s703 + $0xc8] sm:$0xff]
        %v871 = vld [vmem:[%s703 + $0xe8] sm:$0xff]
        %v872 = vmul.f32 %v758, %v864
        %v873 = vmul.f32 %v773, %v865
        %v874 = vmul.f32 %v788, %v866
        %v875 = vmul.f32 %v803, %v867
        %v876 = vmul.f32 %v818, %v868
        %v877 = vmul.f32 %v833, %v869
        %v878 = vmul.f32 %v848, %v870
        %v879 = vmul.f32 %v863, %v871
        %v880 = vld [vmem:[%s703 + $0x18] sm:$0xff]
        %v881 = vld [vmem:[%s703 + $0x38] sm:$0xff]
        %v882 = vld [vmem:[%s703 + $0x58] sm:$0xff]
        %v883 = vld [vmem:[%s703 + $0x78] sm:$0xff]
        %v884 = vld [vmem:[%s703 + $0x98] sm:$0xff]
        %v885 = vld [vmem:[%s703 + $0xb8] sm:$0xff]
        %v886 = vld [vmem:[%s703 + $0xd8] sm:$0xff]
        %v887 = vld [vmem:[%s703 + $0xf8] sm:$0xff]
        %v888 = vld [vmem:[%s703 + $0x10] sm:$0xff]
        %v889 = vld [vmem:[%s703 + $0x30] sm:$0xff]
        %v890 = vld [vmem:[%s703 + $0x50] sm:$0xff]
        %v891 = vld [vmem:[%s703 + $0x70] sm:$0xff]
        %v892 = vld [vmem:[%s703 + $0x90] sm:$0xff]
        %v893 = vld [vmem:[%s703 + $0xb0] sm:$0xff]
        %v894 = vld [vmem:[%s703 + $0xd0] sm:$0xff]
        %v895 = vld [vmem:[%s703 + $0xf0] sm:$0xff]
        %v896 = vsub.f32 0.0, %v888
        %v897 = vsub.f32 0.0, %v889
        %v898 = vsub.f32 0.0, %v890
        %v899 = vsub.f32 0.0, %v891
        %v900 = vsub.f32 0.0, %v892
        %v901 = vsub.f32 0.0, %v893
        %v902 = vsub.f32 0.0, %v894
        %v903 = vsub.f32 0.0, %v895
        %v904 = vmul.f32 %v896, 1.442695
        %v905 = vpow.pop %v904
        %v906 = vmul.f32 %v897, 1.442695
        %v907 = vpow.pop %v906
        %v908 = vmul.f32 %v898, 1.442695
        %v909 = vpow.pop %v908
        %v910 = vmul.f32 %v899, 1.442695
        %v911 = vpow.pop %v910
        %v912 = vmul.f32 %v900, 1.442695
        %v913 = vpow.pop %v912
        %v914 = vmul.f32 %v901, 1.442695
        %v915 = vpow.pop %v914
        %v916 = vmul.f32 %v902, 1.442695
        %v917 = vpow.pop %v916
        %v918 = vmul.f32 %v903, 1.442695
        %v919 = vpow.pop %v918
        %v920 = vadd.f32 %v905, 1.0
        %v921 = vadd.f32 %v907, 1.0
        %v922 = vadd.f32 %v909, 1.0
        %v923 = vadd.f32 %v911, 1.0
        %v924 = vadd.f32 %v913, 1.0
        %v925 = vadd.f32 %v915, 1.0
        %v926 = vadd.f32 %v917, 1.0
        %v927 = vadd.f32 %v919, 1.0
        %v928 = vrcp.pop %v920
        %v929 = vmul.f32 %v920, %v928
        %v930 = vsub.f32 1.0, %v929
        %v931 = vmul.f32 %v928, %v930
        %v932 = vadd.f32 %v928, %v931
        %vm933 = vweird.f32 %v920
        %vm934 = vweird.f32 %v928
        %vm935 = vmor %vm933, %vm934
        %v936 = vsel %vm935, %v928, %v932
        %v937 = vand.u32 2147483647, %v920
        %vm938 = vcmp.eq.f32.partialorder %v937, 8.507059e+37
        %v939 = vand.u32 %v920, 2147483648
        %v940 = vor.u32 1.1754944e-38, %v939
        %v941 = vsel %vm938, %v940, %v936
        %v942 = vmul.f32 1.0, %v941
        %v943 = vrcp.pop %v921
        %v944 = vmul.f32 %v921, %v943
        %v945 = vsub.f32 1.0, %v944
        %v946 = vmul.f32 %v943, %v945
        %v947 = vadd.f32 %v943, %v946
        %vm948 = vweird.f32 %v921
        %vm949 = vweird.f32 %v943
        %vm950 = vmor %vm948, %vm949
        %v951 = vsel %vm950, %v943, %v947
        %v952 = vand.u32 2147483647, %v921
        %vm953 = vcmp.eq.f32.partialorder %v952, 8.507059e+37
        %v954 = vand.u32 %v921, 2147483648
        %v955 = vor.u32 1.1754944e-38, %v954
        %v956 = vsel %vm953, %v955, %v951
        %v957 = vmul.f32 1.0, %v956
        %v958 = vrcp.pop %v922
        %v959 = vmul.f32 %v922, %v958
        %v960 = vsub.f32 1.0, %v959
        %v961 = vmul.f32 %v958, %v960
        %v962 = vadd.f32 %v958, %v961
        %vm963 = vweird.f32 %v922
        %vm964 = vweird.f32 %v958
        %vm965 = vmor %vm963, %vm964
        %v966 = vsel %vm965, %v958, %v962
        %v967 = vand.u32 2147483647, %v922
        %vm968 = vcmp.eq.f32.partialorder %v967, 8.507059e+37
        %v969 = vand.u32 %v922, 2147483648
        %v970 = vor.u32 1.1754944e-38, %v969
        %v971 = vsel %vm968, %v970, %v966
        %v972 = vmul.f32 1.0, %v971
        %v973 = vrcp.pop %v923
        %v974 = vmul.f32 %v923, %v973
        %v975 = vsub.f32 1.0, %v974
        %v976 = vmul.f32 %v973, %v975
        %v977 = vadd.f32 %v973, %v976
        %vm978 = vweird.f32 %v923
        %vm979 = vweird.f32 %v973
        %vm980 = vmor %vm978, %vm979
        %v981 = vsel %vm980, %v973, %v977
        %v982 = vand.u32 2147483647, %v923
        %vm983 = vcmp.eq.f32.partialorder %v982, 8.507059e+37
        %v984 = vand.u32 %v923, 2147483648
        %v985 = vor.u32 1.1754944e-38, %v984
        %v986 = vsel %vm983, %v985, %v981
        %v987 = vmul.f32 1.0, %v986
        %v988 = vrcp.pop %v924
        %v989 = vmul.f32 %v924, %v988
        %v990 = vsub.f32 1.0, %v989
        %v991 = vmul.f32 %v988, %v990
        %v992 = vadd.f32 %v988, %v991
        %vm993 = vweird.f32 %v924
        %vm994 = vweird.f32 %v988
        %vm995 = vmor %vm993, %vm994
        %v996 = vsel %vm995, %v988, %v992
        %v997 = vand.u32 2147483647, %v924
        %vm998 = vcmp.eq.f32.partialorder %v997, 8.507059e+37
        %v999 = vand.u32 %v924, 2147483648
        %v1000 = vor.u32 1.1754944e-38, %v999
        %v1001 = vsel %vm998, %v1000, %v996
        %v1002 = vmul.f32 1.0, %v1001
        %v1003 = vrcp.pop %v925
        %v1004 = vmul.f32 %v925, %v1003
        %v1005 = vsub.f32 1.0, %v1004
        %v1006 = vmul.f32 %v1003, %v1005
        %v1007 = vadd.f32 %v1003, %v1006
        %vm1008 = vweird.f32 %v925
        %vm1009 = vweird.f32 %v1003
        %vm1010 = vmor %vm1008, %vm1009
        %v1011 = vsel %vm1010, %v1003, %v1007
        %v1012 = vand.u32 2147483647, %v925
        %vm1013 = vcmp.eq.f32.partialorder %v1012, 8.507059e+37
        %v1014 = vand.u32 %v925, 2147483648
        %v1015 = vor.u32 1.1754944e-38, %v1014
        %v1016 = vsel %vm1013, %v1015, %v1011
        %v1017 = vmul.f32 1.0, %v1016
        %v1018 = vrcp.pop %v926
        %v1019 = vmul.f32 %v926, %v1018
        %v1020 = vsub.f32 1.0, %v1019
        %v1021 = vmul.f32 %v1018, %v1020
        %v1022 = vadd.f32 %v1018, %v1021
        %vm1023 = vweird.f32 %v926
        %vm1024 = vweird.f32 %v1018
        %vm1025 = vmor %vm1023, %vm1024
        %v1026 = vsel %vm1025, %v1018, %v1022
        %v1027 = vand.u32 2147483647, %v926
        %vm1028 = vcmp.eq.f32.partialorder %v1027, 8.507059e+37
        %v1029 = vand.u32 %v926, 2147483648
        %v1030 = vor.u32 1.1754944e-38, %v1029
        %v1031 = vsel %vm1028, %v1030, %v1026
        %v1032 = vmul.f32 1.0, %v1031
        %v1033 = vrcp.pop %v927
        %v1034 = vmul.f32 %v927, %v1033
        %v1035 = vsub.f32 1.0, %v1034
        %v1036 = vmul.f32 %v1033, %v1035
        %v1037 = vadd.f32 %v1033, %v1036
        %vm1038 = vweird.f32 %v927
        %vm1039 = vweird.f32 %v1033
        %vm1040 = vmor %vm1038, %vm1039
        %v1041 = vsel %vm1040, %v1033, %v1037
        %v1042 = vand.u32 2147483647, %v927
        %vm1043 = vcmp.eq.f32.partialorder %v1042, 8.507059e+37
        %v1044 = vand.u32 %v927, 2147483648
        %v1045 = vor.u32 1.1754944e-38, %v1044
        %v1046 = vsel %vm1043, %v1045, %v1041
        %v1047 = vmul.f32 1.0, %v1046
        %v1048 = vsub.f32 %v872, %v880
        %v1049 = vsub.f32 %v873, %v881
        %v1050 = vsub.f32 %v874, %v882
        %v1051 = vsub.f32 %v875, %v883
        %v1052 = vsub.f32 %v876, %v884
        %v1053 = vsub.f32 %v877, %v885
        %v1054 = vsub.f32 %v878, %v886
        %v1055 = vsub.f32 %v879, %v887
        %v1056 = vmul.f32 %v942, %v1048
        %v1057 = vmul.f32 %v957, %v1049
        %v1058 = vmul.f32 %v972, %v1050
        %v1059 = vmul.f32 %v987, %v1051
        %v1060 = vmul.f32 %v1002, %v1052
        %v1061 = vmul.f32 %v1017, %v1053
        %v1062 = vmul.f32 %v1032, %v1054
        %v1063 = vmul.f32 %v1047, %v1055
        %v1064 = vadd.f32 %v880, %v1056
        %v1065 = vadd.f32 %v881, %v1057
        %v1066 = vadd.f32 %v882, %v1058
        %v1067 = vadd.f32 %v883, %v1059
        %v1068 = vadd.f32 %v884, %v1060
        %v1069 = vadd.f32 %v885, %v1061
        %v1070 = vadd.f32 %v886, %v1062
        %v1071 = vadd.f32 %v887, %v1063
        %1072 = vst [vmem:[%s282] sm:$0xff] %v1064
        %1073 = vst [vmem:[%s282 + $0x8] sm:$0xff] %v1065
        %1074 = vst [vmem:[%s282 + $0x10] sm:$0xff] %v1066
        %1075 = vst [vmem:[%s282 + $0x18] sm:$0xff] %v1067
        %1076 = vst [vmem:[%s282 + $0x20] sm:$0xff] %v1068
        %1077 = vst [vmem:[%s282 + $0x28] sm:$0xff] %v1069
        %1078 = vst [vmem:[%s282 + $0x30] sm:$0xff] %v1070
        %1079 = vst [vmem:[%s282 + $0x38] sm:$0xff] %v1071
        %s1080 = smul.u32 8, 4
        %s1081 = smul.addr %s1080, 8
        %s1082 = scalar_lea.vmem [#allocation2], %s1081
        %v1083 = vld [vmem:[%s1082] sm:$0xff]
        %v1084 = vld [vmem:[%s1082 + $0x20] sm:$0xff]
        %v1085 = vld [vmem:[%s1082 + $0x40] sm:$0xff]
        %v1086 = vld [vmem:[%s1082 + $0x60] sm:$0xff]
        %v1087 = vld [vmem:[%s1082 + $0x80] sm:$0xff]
        %v1088 = vld [vmem:[%s1082 + $0xa0] sm:$0xff]
        %v1089 = vld [vmem:[%s1082 + $0xc0] sm:$0xff]
        %v1090 = vld [vmem:[%s1082 + $0xe0] sm:$0xff]
        %v1091 = vsub.f32 0.0, %v1083
        %v1092 = vsub.f32 0.0, %v1084
        %v1093 = vsub.f32 0.0, %v1085
        %v1094 = vsub.f32 0.0, %v1086
        %v1095 = vsub.f32 0.0, %v1087
        %v1096 = vsub.f32 0.0, %v1088
        %v1097 = vsub.f32 0.0, %v1089
        %v1098 = vsub.f32 0.0, %v1090
        %v1099 = vmul.f32 %v1091, 1.442695
        %v1100 = vpow.pop %v1099
        %v1101 = vmul.f32 %v1092, 1.442695
        %v1102 = vpow.pop %v1101
        %v1103 = vmul.f32 %v1093, 1.442695
        %v1104 = vpow.pop %v1103
        %v1105 = vmul.f32 %v1094, 1.442695
        %v1106 = vpow.pop %v1105
        %v1107 = vmul.f32 %v1095, 1.442695
        %v1108 = vpow.pop %v1107
        %v1109 = vmul.f32 %v1096, 1.442695
        %v1110 = vpow.pop %v1109
        %v1111 = vmul.f32 %v1097, 1.442695
        %v1112 = vpow.pop %v1111
        %v1113 = vmul.f32 %v1098, 1.442695
        %v1114 = vpow.pop %v1113
        %v1115 = vadd.f32 %v1100, 1.0
        %v1116 = vadd.f32 %v1102, 1.0
        %v1117 = vadd.f32 %v1104, 1.0
        %v1118 = vadd.f32 %v1106, 1.0
        %v1119 = vadd.f32 %v1108, 1.0
        %v1120 = vadd.f32 %v1110, 1.0
        %v1121 = vadd.f32 %v1112, 1.0
        %v1122 = vadd.f32 %v1114, 1.0
        %v1123 = vrcp.pop %v1115
        %v1124 = vmul.f32 %v1115, %v1123
        %v1125 = vsub.f32 1.0, %v1124
        %v1126 = vmul.f32 %v1123, %v1125
        %v1127 = vadd.f32 %v1123, %v1126
        %vm1128 = vweird.f32 %v1115
        %vm1129 = vweird.f32 %v1123
        %vm1130 = vmor %vm1128, %vm1129
        %v1131 = vsel %vm1130, %v1123, %v1127
        %v1132 = vand.u32 2147483647, %v1115
        %vm1133 = vcmp.eq.f32.partialorder %v1132, 8.507059e+37
        %v1134 = vand.u32 %v1115, 2147483648
        %v1135 = vor.u32 1.1754944e-38, %v1134
        %v1136 = vsel %vm1133, %v1135, %v1131
        %v1137 = vmul.f32 1.0, %v1136
        %v1138 = vrcp.pop %v1116
        %v1139 = vmul.f32 %v1116, %v1138
        %v1140 = vsub.f32 1.0, %v1139
        %v1141 = vmul.f32 %v1138, %v1140
        %v1142 = vadd.f32 %v1138, %v1141
        %vm1143 = vweird.f32 %v1116
        %vm1144 = vweird.f32 %v1138
        %vm1145 = vmor %vm1143, %vm1144
        %v1146 = vsel %vm1145, %v1138, %v1142
        %v1147 = vand.u32 2147483647, %v1116
        %vm1148 = vcmp.eq.f32.partialorder %v1147, 8.507059e+37
        %v1149 = vand.u32 %v1116, 2147483648
        %v1150 = vor.u32 1.1754944e-38, %v1149
        %v1151 = vsel %vm1148, %v1150, %v1146
        %v1152 = vmul.f32 1.0, %v1151
        %v1153 = vrcp.pop %v1117
        %v1154 = vmul.f32 %v1117, %v1153
        %v1155 = vsub.f32 1.0, %v1154
        %v1156 = vmul.f32 %v1153, %v1155
        %v1157 = vadd.f32 %v1153, %v1156
        %vm1158 = vweird.f32 %v1117
        %vm1159 = vweird.f32 %v1153
        %vm1160 = vmor %vm1158, %vm1159
        %v1161 = vsel %vm1160, %v1153, %v1157
        %v1162 = vand.u32 2147483647, %v1117
        %vm1163 = vcmp.eq.f32.partialorder %v1162, 8.507059e+37
        %v1164 = vand.u32 %v1117, 2147483648
        %v1165 = vor.u32 1.1754944e-38, %v1164
        %v1166 = vsel %vm1163, %v1165, %v1161
        %v1167 = vmul.f32 1.0, %v1166
        %v1168 = vrcp.pop %v1118
        %v1169 = vmul.f32 %v1118, %v1168
        %v1170 = vsub.f32 1.0, %v1169
        %v1171 = vmul.f32 %v1168, %v1170
        %v1172 = vadd.f32 %v1168, %v1171
        %vm1173 = vweird.f32 %v1118
        %vm1174 = vweird.f32 %v1168
        %vm1175 = vmor %vm1173, %vm1174
        %v1176 = vsel %vm1175, %v1168, %v1172
        %v1177 = vand.u32 2147483647, %v1118
        %vm1178 = vcmp.eq.f32.partialorder %v1177, 8.507059e+37
        %v1179 = vand.u32 %v1118, 2147483648
        %v1180 = vor.u32 1.1754944e-38, %v1179
        %v1181 = vsel %vm1178, %v1180, %v1176
        %v1182 = vmul.f32 1.0, %v1181
        %v1183 = vrcp.pop %v1119
        %v1184 = vmul.f32 %v1119, %v1183
        %v1185 = vsub.f32 1.0, %v1184
        %v1186 = vmul.f32 %v1183, %v1185
        %v1187 = vadd.f32 %v1183, %v1186
        %vm1188 = vweird.f32 %v1119
        %vm1189 = vweird.f32 %v1183
        %vm1190 = vmor %vm1188, %vm1189
        %v1191 = vsel %vm1190, %v1183, %v1187
        %v1192 = vand.u32 2147483647, %v1119
        %vm1193 = vcmp.eq.f32.partialorder %v1192, 8.507059e+37
        %v1194 = vand.u32 %v1119, 2147483648
        %v1195 = vor.u32 1.1754944e-38, %v1194
        %v1196 = vsel %vm1193, %v1195, %v1191
        %v1197 = vmul.f32 1.0, %v1196
        %v1198 = vrcp.pop %v1120
        %v1199 = vmul.f32 %v1120, %v1198
        %v1200 = vsub.f32 1.0, %v1199
        %v1201 = vmul.f32 %v1198, %v1200
        %v1202 = vadd.f32 %v1198, %v1201
        %vm1203 = vweird.f32 %v1120
        %vm1204 = vweird.f32 %v1198
        %vm1205 = vmor %vm1203, %vm1204
        %v1206 = vsel %vm1205, %v1198, %v1202
        %v1207 = vand.u32 2147483647, %v1120
        %vm1208 = vcmp.eq.f32.partialorder %v1207, 8.507059e+37
        %v1209 = vand.u32 %v1120, 2147483648
        %v1210 = vor.u32 1.1754944e-38, %v1209
        %v1211 = vsel %vm1208, %v1210, %v1206
        %v1212 = vmul.f32 1.0, %v1211
        %v1213 = vrcp.pop %v1121
        %v1214 = vmul.f32 %v1121, %v1213
        %v1215 = vsub.f32 1.0, %v1214
        %v1216 = vmul.f32 %v1213, %v1215
        %v1217 = vadd.f32 %v1213, %v1216
        %vm1218 = vweird.f32 %v1121
        %vm1219 = vweird.f32 %v1213
        %vm1220 = vmor %vm1218, %vm1219
        %v1221 = vsel %vm1220, %v1213, %v1217
        %v1222 = vand.u32 2147483647, %v1121
        %vm1223 = vcmp.eq.f32.partialorder %v1222, 8.507059e+37
        %v1224 = vand.u32 %v1121, 2147483648
        %v1225 = vor.u32 1.1754944e-38, %v1224
        %v1226 = vsel %vm1223, %v1225, %v1221
        %v1227 = vmul.f32 1.0, %v1226
        %v1228 = vrcp.pop %v1122
        %v1229 = vmul.f32 %v1122, %v1228
        %v1230 = vsub.f32 1.0, %v1229
        %v1231 = vmul.f32 %v1228, %v1230
        %v1232 = vadd.f32 %v1228, %v1231
        %vm1233 = vweird.f32 %v1122
        %vm1234 = vweird.f32 %v1228
        %vm1235 = vmor %vm1233, %vm1234
        %v1236 = vsel %vm1235, %v1228, %v1232
        %v1237 = vand.u32 2147483647, %v1122
        %vm1238 = vcmp.eq.f32.partialorder %v1237, 8.507059e+37
        %v1239 = vand.u32 %v1122, 2147483648
        %v1240 = vor.u32 1.1754944e-38, %v1239
        %v1241 = vsel %vm1238, %v1240, %v1236
        %v1242 = vmul.f32 1.0, %v1241
        %v1243 = vld [vmem:[%s1082 + $0x8] sm:$0xff]
        %v1244 = vld [vmem:[%s1082 + $0x28] sm:$0xff]
        %v1245 = vld [vmem:[%s1082 + $0x48] sm:$0xff]
        %v1246 = vld [vmem:[%s1082 + $0x68] sm:$0xff]
        %v1247 = vld [vmem:[%s1082 + $0x88] sm:$0xff]
        %v1248 = vld [vmem:[%s1082 + $0xa8] sm:$0xff]
        %v1249 = vld [vmem:[%s1082 + $0xc8] sm:$0xff]
        %v1250 = vld [vmem:[%s1082 + $0xe8] sm:$0xff]
        %v1251 = vmul.f32 %v1137, %v1243
        %v1252 = vmul.f32 %v1152, %v1244
        %v1253 = vmul.f32 %v1167, %v1245
        %v1254 = vmul.f32 %v1182, %v1246
        %v1255 = vmul.f32 %v1197, %v1247
        %v1256 = vmul.f32 %v1212, %v1248
        %v1257 = vmul.f32 %v1227, %v1249
        %v1258 = vmul.f32 %v1242, %v1250
        %v1259 = vld [vmem:[%s1082 + $0x18] sm:$0xff]
        %v1260 = vld [vmem:[%s1082 + $0x38] sm:$0xff]
        %v1261 = vld [vmem:[%s1082 + $0x58] sm:$0xff]
        %v1262 = vld [vmem:[%s1082 + $0x78] sm:$0xff]
        %v1263 = vld [vmem:[%s1082 + $0x98] sm:$0xff]
        %v1264 = vld [vmem:[%s1082 + $0xb8] sm:$0xff]
        %v1265 = vld [vmem:[%s1082 + $0xd8] sm:$0xff]
        %v1266 = vld [vmem:[%s1082 + $0xf8] sm:$0xff]
        %v1267 = vld [vmem:[%s1082 + $0x10] sm:$0xff]
        %v1268 = vld [vmem:[%s1082 + $0x30] sm:$0xff]
        %v1269 = vld [vmem:[%s1082 + $0x50] sm:$0xff]
        %v1270 = vld [vmem:[%s1082 + $0x70] sm:$0xff]
        %v1271 = vld [vmem:[%s1082 + $0x90] sm:$0xff]
        %v1272 = vld [vmem:[%s1082 + $0xb0] sm:$0xff]
        %v1273 = vld [vmem:[%s1082 + $0xd0] sm:$0xff]
        %v1274 = vld [vmem:[%s1082 + $0xf0] sm:$0xff]
        %v1275 = vsub.f32 0.0, %v1267
        %v1276 = vsub.f32 0.0, %v1268
        %v1277 = vsub.f32 0.0, %v1269
        %v1278 = vsub.f32 0.0, %v1270
        %v1279 = vsub.f32 0.0, %v1271
        %v1280 = vsub.f32 0.0, %v1272
        %v1281 = vsub.f32 0.0, %v1273
        %v1282 = vsub.f32 0.0, %v1274
        %v1283 = vmul.f32 %v1275, 1.442695
        %v1284 = vpow.pop %v1283
        %v1285 = vmul.f32 %v1276, 1.442695
        %v1286 = vpow.pop %v1285
        %v1287 = vmul.f32 %v1277, 1.442695
        %v1288 = vpow.pop %v1287
        %v1289 = vmul.f32 %v1278, 1.442695
        %v1290 = vpow.pop %v1289
        %v1291 = vmul.f32 %v1279, 1.442695
        %v1292 = vpow.pop %v1291
        %v1293 = vmul.f32 %v1280, 1.442695
        %v1294 = vpow.pop %v1293
        %v1295 = vmul.f32 %v1281, 1.442695
        %v1296 = vpow.pop %v1295
        %v1297 = vmul.f32 %v1282, 1.442695
        %v1298 = vpow.pop %v1297
        %v1299 = vadd.f32 %v1284, 1.0
        %v1300 = vadd.f32 %v1286, 1.0
        %v1301 = vadd.f32 %v1288, 1.0
        %v1302 = vadd.f32 %v1290, 1.0
        %v1303 = vadd.f32 %v1292, 1.0
        %v1304 = vadd.f32 %v1294, 1.0
        %v1305 = vadd.f32 %v1296, 1.0
        %v1306 = vadd.f32 %v1298, 1.0
        %v1307 = vrcp.pop %v1299
        %v1308 = vmul.f32 %v1299, %v1307
        %v1309 = vsub.f32 1.0, %v1308
        %v1310 = vmul.f32 %v1307, %v1309
        %v1311 = vadd.f32 %v1307, %v1310
        %vm1312 = vweird.f32 %v1299
        %vm1313 = vweird.f32 %v1307
        %vm1314 = vmor %vm1312, %vm1313
        %v1315 = vsel %vm1314, %v1307, %v1311
        %v1316 = vand.u32 2147483647, %v1299
        %vm1317 = vcmp.eq.f32.partialorder %v1316, 8.507059e+37
        %v1318 = vand.u32 %v1299, 2147483648
        %v1319 = vor.u32 1.1754944e-38, %v1318
        %v1320 = vsel %vm1317, %v1319, %v1315
        %v1321 = vmul.f32 1.0, %v1320
        %v1322 = vrcp.pop %v1300
        %v1323 = vmul.f32 %v1300, %v1322
        %v1324 = vsub.f32 1.0, %v1323
        %v1325 = vmul.f32 %v1322, %v1324
        %v1326 = vadd.f32 %v1322, %v1325
        %vm1327 = vweird.f32 %v1300
        %vm1328 = vweird.f32 %v1322
        %vm1329 = vmor %vm1327, %vm1328
        %v1330 = vsel %vm1329, %v1322, %v1326
        %v1331 = vand.u32 2147483647, %v1300
        %vm1332 = vcmp.eq.f32.partialorder %v1331, 8.507059e+37
        %v1333 = vand.u32 %v1300, 2147483648
        %v1334 = vor.u32 1.1754944e-38, %v1333
        %v1335 = vsel %vm1332, %v1334, %v1330
        %v1336 = vmul.f32 1.0, %v1335
        %v1337 = vrcp.pop %v1301
        %v1338 = vmul.f32 %v1301, %v1337
        %v1339 = vsub.f32 1.0, %v1338
        %v1340 = vmul.f32 %v1337, %v1339
        %v1341 = vadd.f32 %v1337, %v1340
        %vm1342 = vweird.f32 %v1301
        %vm1343 = vweird.f32 %v1337
        %vm1344 = vmor %vm1342, %vm1343
        %v1345 = vsel %vm1344, %v1337, %v1341
        %v1346 = vand.u32 2147483647, %v1301
        %vm1347 = vcmp.eq.f32.partialorder %v1346, 8.507059e+37
        %v1348 = vand.u32 %v1301, 2147483648
        %v1349 = vor.u32 1.1754944e-38, %v1348
        %v1350 = vsel %vm1347, %v1349, %v1345
        %v1351 = vmul.f32 1.0, %v1350
        %v1352 = vrcp.pop %v1302
        %v1353 = vmul.f32 %v1302, %v1352
        %v1354 = vsub.f32 1.0, %v1353
        %v1355 = vmul.f32 %v1352, %v1354
        %v1356 = vadd.f32 %v1352, %v1355
        %vm1357 = vweird.f32 %v1302
        %vm1358 = vweird.f32 %v1352
        %vm1359 = vmor %vm1357, %vm1358
        %v1360 = vsel %vm1359, %v1352, %v1356
        %v1361 = vand.u32 2147483647, %v1302
        %vm1362 = vcmp.eq.f32.partialorder %v1361, 8.507059e+37
        %v1363 = vand.u32 %v1302, 2147483648
        %v1364 = vor.u32 1.1754944e-38, %v1363
        %v1365 = vsel %vm1362, %v1364, %v1360
        %v1366 = vmul.f32 1.0, %v1365
        %v1367 = vrcp.pop %v1303
        %v1368 = vmul.f32 %v1303, %v1367
        %v1369 = vsub.f32 1.0, %v1368
        %v1370 = vmul.f32 %v1367, %v1369
        %v1371 = vadd.f32 %v1367, %v1370
        %vm1372 = vweird.f32 %v1303
        %vm1373 = vweird.f32 %v1367
        %vm1374 = vmor %vm1372, %vm1373
        %v1375 = vsel %vm1374, %v1367, %v1371
        %v1376 = vand.u32 2147483647, %v1303
        %vm1377 = vcmp.eq.f32.partialorder %v1376, 8.507059e+37
        %v1378 = vand.u32 %v1303, 2147483648
        %v1379 = vor.u32 1.1754944e-38, %v1378
        %v1380 = vsel %vm1377, %v1379, %v1375
        %v1381 = vmul.f32 1.0, %v1380
        %v1382 = vrcp.pop %v1304
        %v1383 = vmul.f32 %v1304, %v1382
        %v1384 = vsub.f32 1.0, %v1383
        %v1385 = vmul.f32 %v1382, %v1384
        %v1386 = vadd.f32 %v1382, %v1385
        %vm1387 = vweird.f32 %v1304
        %vm1388 = vweird.f32 %v1382
        %vm1389 = vmor %vm1387, %vm1388
        %v1390 = vsel %vm1389, %v1382, %v1386
        %v1391 = vand.u32 2147483647, %v1304
        %vm1392 = vcmp.eq.f32.partialorder %v1391, 8.507059e+37
        %v1393 = vand.u32 %v1304, 2147483648
        %v1394 = vor.u32 1.1754944e-38, %v1393
        %v1395 = vsel %vm1392, %v1394, %v1390
        %v1396 = vmul.f32 1.0, %v1395
        %v1397 = vrcp.pop %v1305
        %v1398 = vmul.f32 %v1305, %v1397
        %v1399 = vsub.f32 1.0, %v1398
        %v1400 = vmul.f32 %v1397, %v1399
        %v1401 = vadd.f32 %v1397, %v1400
        %vm1402 = vweird.f32 %v1305
        %vm1403 = vweird.f32 %v1397
        %vm1404 = vmor %vm1402, %vm1403
        %v1405 = vsel %vm1404, %v1397, %v1401
        %v1406 = vand.u32 2147483647, %v1305
        %vm1407 = vcmp.eq.f32.partialorder %v1406, 8.507059e+37
        %v1408 = vand.u32 %v1305, 2147483648
        %v1409 = vor.u32 1.1754944e-38, %v1408
        %v1410 = vsel %vm1407, %v1409, %v1405
        %v1411 = vmul.f32 1.0, %v1410
        %v1412 = vrcp.pop %v1306
        %v1413 = vmul.f32 %v1306, %v1412
        %v1414 = vsub.f32 1.0, %v1413
        %v1415 = vmul.f32 %v1412, %v1414
        %v1416 = vadd.f32 %v1412, %v1415
        %vm1417 = vweird.f32 %v1306
        %vm1418 = vweird.f32 %v1412
        %vm1419 = vmor %vm1417, %vm1418
        %v1420 = vsel %vm1419, %v1412, %v1416
        %v1421 = vand.u32 2147483647, %v1306
        %vm1422 = vcmp.eq.f32.partialorder %v1421, 8.507059e+37
        %v1423 = vand.u32 %v1306, 2147483648
        %v1424 = vor.u32 1.1754944e-38, %v1423
        %v1425 = vsel %vm1422, %v1424, %v1420
        %v1426 = vmul.f32 1.0, %v1425
        %v1427 = vsub.f32 %v1251, %v1259
        %v1428 = vsub.f32 %v1252, %v1260
        %v1429 = vsub.f32 %v1253, %v1261
        %v1430 = vsub.f32 %v1254, %v1262
        %v1431 = vsub.f32 %v1255, %v1263
        %v1432 = vsub.f32 %v1256, %v1264
        %v1433 = vsub.f32 %v1257, %v1265
        %v1434 = vsub.f32 %v1258, %v1266
        %v1435 = vmul.f32 %v1321, %v1427
        %v1436 = vmul.f32 %v1336, %v1428
        %v1437 = vmul.f32 %v1351, %v1429
        %v1438 = vmul.f32 %v1366, %v1430
        %v1439 = vmul.f32 %v1381, %v1431
        %v1440 = vmul.f32 %v1396, %v1432
        %v1441 = vmul.f32 %v1411, %v1433
        %v1442 = vmul.f32 %v1426, %v1434
        %v1443 = vadd.f32 %v1259, %v1435
        %v1444 = vadd.f32 %v1260, %v1436
        %v1445 = vadd.f32 %v1261, %v1437
        %v1446 = vadd.f32 %v1262, %v1438
        %v1447 = vadd.f32 %v1263, %v1439
        %v1448 = vadd.f32 %v1264, %v1440
        %v1449 = vadd.f32 %v1265, %v1441
        %v1450 = vadd.f32 %v1266, %v1442
        %s1451 = scalar_lea.vmem %s282, 64 [#allocation9]
        %1452 = vst [vmem:[%s1451] sm:$0xff] %v1443
        %1453 = vst [vmem:[%s1451 + $0x8] sm:$0xff] %v1444
        %1454 = vst [vmem:[%s1451 + $0x10] sm:$0xff] %v1445
        %1455 = vst [vmem:[%s1451 + $0x18] sm:$0xff] %v1446
        %1456 = vst [vmem:[%s1451 + $0x20] sm:$0xff] %v1447
        %1457 = vst [vmem:[%s1451 + $0x28] sm:$0xff] %v1448
        %1458 = vst [vmem:[%s1451 + $0x30] sm:$0xff] %v1449
        %1459 = vst [vmem:[%s1451 + $0x38] sm:$0xff] %v1450
        %s1460 = sand.u32 %s123, 1
        %s1461 = scalar_lea.sflag [#allocation5], %s1460
        %s1462 = sand.u32 %s123, 1
        %s1463 = smul.addr %s1462, 128
        %s1464 = scalar_lea.vmem [#allocation9], %s1463
        // Predicated region
        $region45: #{tpu_custom_call.1} parent=31 // pred_check
          %p1465 = pneg %p133
        $region46: #{tpu_custom_call.1} parent=31 // pred_check_branch
          %1467 = sbr.rel (%p1465) target = $region48
        $region47: #{tpu_custom_call.1} parent=31 // pred_region
          %s1468 = smul.u32 16, %s27
          %1470 = vsyncadd %s1461, 0
          %s1471 = smul.addr %s1468, 2
          %s1472 = sadd.s32 %s28, %s1471
          %s1473 = smul.addr %s1472, 8
          %s1474 = scalar_lea.hbm %s3, %s1473
          %s1475 = sshll.u32 %s1464, 4
          %s1476 = int_to_ptr.vmem [resolvable:$true] %s1475
          %s1477 = sshll.u32 %s1474, 4
          %s1478 = int_to_ptr.hbm [resolvable:$true] %s1477
          %1483 = dma.vmem_to_hbm [thread:$0]  %s1476, 2048, %s1478, %s1461, 128, 256, 8
        $region48: #{tpu_custom_call.1} parent=31 // pred_fallthru
          _
      $region32: #{tpu_custom_call.1} parent=5 // pred_fallthru
        _
      %p1484 = scmp.le.s32.totalorder 2, %s18
      // Predicated region
      $region49: #{tpu_custom_call.1} parent=5 // pred_check
        %p1485 = pneg %p1484
      $region50: #{tpu_custom_call.1} parent=5 // pred_check_branch
        %1487 = sbr.rel (%p1485) target = $region52
      $region51: #{tpu_custom_call.1} parent=5 // pred_region
        %s1488 = ssub.s32 %s18, 2
        // Predicated region
        $region53: #{tpu_custom_call.1} parent=51 // pred_check
          %p1489 = pneg %p139
        $region54: #{tpu_custom_call.1} parent=51 // pred_check_branch
          %1491 = sbr.rel (%p1489) target = $region56
        $region55: #{tpu_custom_call.1} parent=51 // pred_region
          %s1492 = sand.u32 %s124, 1
          %s1493 = scalar_lea.sflag [#allocation5], %s1492
          %s1494 = sand.u32 %s124, 1
          %s1495 = smul.addr %s1494, 128
          %s1496 = scalar_lea.vmem [#allocation9], %s1495
          %1498 = dma.done %s1493, 2048
        $region56: #{tpu_custom_call.1} parent=51 // pred_fallthru
          _
      $region52: #{tpu_custom_call.1} parent=5 // pred_fallthru
        _
    $region6: #{tpu_custom_call.1} parent=1 // loop_footer
      %s22 = sadd.s32 1, %s18
    $region7: #{tpu_custom_call.1} parent=1 // loop_footer_branch
      %17 = sbr.rel target = $region3
    $region8: #{tpu_custom_call.1} parent=1 // loop_exit
      _
    %1499 = vsyncpa [#allocation4], 1
    %s1500 = scalar_lea.sflag [#allocation4], 1
    %1501 = vsyncpa %s1500, 1
    %1502 = vsyncpa [#allocation7], 1
    %s1503 = scalar_lea.sflag [#allocation7], 1
    %1504 = vsyncpa %s1503, 1
    %1505 = vsyncpa [#allocation5], 1
    %s1506 = scalar_lea.sflag [#allocation5], 1
    %1507 = vsyncpa %s1506, 1

</llo_original>
